<compile_context>
chip_gen: v7x
topology: tpu7x:2x2x1
jax: 0.10.0
libtpu: 0.0.40
codegen_flags: <defaults>
</compile_context>

<pallas_src>
import functools

import jax
import jax.numpy as jnp
from jax.experimental import pallas as pl
from jax.experimental.pallas import tpu as pltpu

# ---------------- tiny-BERT config (small, consistent with the forward) ------
B = 2            # batch
S = 8            # sequence length
H = 32           # hidden size (stands in for 768)
N_HEADS = 2
HEAD_DIM = H // N_HEADS
FFN = 64         # intermediate size
N_LAYERS = 2
VOCAB = 50
POOLER_FT = H    # pooler_ft=None -> same as hidden size
NUM_CLASSES = 3  # len(CLASSES) is not defined in the snippet; pick 3
LN_EPS = 1e-12
ATT_SCALE = 1.0 / (HEAD_DIM ** 0.5)   # 0.25: power of two -> exact when folded

# ---- packed small-vector slab layout: one lane-dense (n_rows, 128) f32 slab -
VEC_W = 128
ROW_EMB_G, ROW_EMB_B, ROW_POOL_B, ROW_LOGIT_B = 0, 1, 2, 3
ROW_LAYER0 = 4
ROWS_PER_LAYER = 8
R_BQKV, R_BO, R_B1, R_B2, R_LN1G, R_LN1B, R_LN2G, R_LN2B = range(ROWS_PER_LAYER)

_VMEM = pl.BlockSpec(memory_space=pltpu.MemorySpace.VMEM)


# ---------------- shared math helpers (used in-kernel and by the reference) --

def _layernorm(x, g, b):
    mu = jnp.mean(x, axis=-1, keepdims=True)
    var = jnp.mean((x - mu) * (x - mu), axis=-1, keepdims=True)
    return (x - mu) * jax.lax.rsqrt(var + LN_EPS) * g + b


def _mm(x, w):
    """MXU matmul: bf16 operands, f32 accumulation."""
    return jnp.dot(x.astype(jnp.bfloat16), w.astype(jnp.bfloat16),
                   preferred_element_type=jnp.float32)


def _gelu(x):
    # tanh-approx GELU (EUP friendly).
    return 0.5 * x * (1.0 + jnp.tanh(0.7978845608028654 * (x + 0.044715 * x * x * x)))


# ---------------- the single fused forward kernel -----------------------------

def _fused_forward_kernel(x0_ref, bias_ref, vecs_ref,
                          wqkv_ref, wo_ref, w1_ref, w2_ref, whead_ref,
                          out_ref, *, avg_pool):
    """Whole 2-layer encoder + pooler + logit head, all VMEM/vreg-resident."""

    def vec(row, width):
        # static slice of the packed parameter slab -> (1, width) f32 view
        return vecs_ref[row:row + 1, 0:width]

    bias = bias_ref[...]                                          # (B, S) key bias
    x = _layernorm(x0_ref[...], vec(ROW_EMB_G, H), vec(ROW_EMB_B, H))  # (B*S,H) f32

    for l in range(N_LAYERS):                                     # static unroll
        base = ROW_LAYER0 + l * ROWS_PER_LAYER

        # --- fused QKV projection: one MXU pass, cast to bf16 once -----------
        qkv = (_mm(x, wqkv_ref[l]) + vec(base + R_BQKV, 3 * H)).astype(jnp.bfloat16)
        qkv3 = qkv.reshape(B, S, 3 * H)                           # row-split: free

        # --- self attention: batched over B per head (2 dot_generals / head) -
        ctx_heads = []
        for h in range(N_HEADS):
            q = qkv3[:, :, h * HEAD_DIM:(h + 1) * HEAD_DIM]                # (B,S,Dh)
            k = qkv3[:, :, H + h * HEAD_DIM:H + (h + 1) * HEAD_DIM]        # (B,S,Dh)
            v = qkv3[:, :, 2 * H + h * HEAD_DIM:2 * H + (h + 1) * HEAD_DIM]
            # attention scale already folded into Q weights + Q bias at init
            s = jnp.einsum('bqd,bkd->bqk', q, k,
                           preferred_element_type=jnp.float32) + bias[:, None, :]
            s = s - jnp.max(s, axis=-1, keepdims=True)
            p = jnp.exp(s)
            p = p * pl.reciprocal(jnp.sum(p, axis=-1, keepdims=True), approx=True)
            ctx_heads.append(jnp.einsum('bqk,bkd->bqd', p.astype(jnp.bfloat16), v,
                                        preferred_element_type=jnp.float32))
        ctx = jnp.concatenate(ctx_heads, axis=-1).reshape(B * S, H)        # (B*S,H)

        attn = _mm(ctx, wo_ref[l]) + vec(base + R_BO, H)
        x = _layernorm(attn + x, vec(base + R_LN1G, H), vec(base + R_LN1B, H))

        # --- feed forward -----------------------------------------------------
        h1 = _gelu(_mm(x, w1_ref[l]) + vec(base + R_B1, FFN))
        h2 = _mm(h1, w2_ref[l]) + vec(base + R_B2, H)
        x = _layernorm(h2 + x, vec(base + R_LN2G, H), vec(base + R_LN2B, H))

    # --- pooling (nb_layers == 1 path) + Linear/Tanh pooler + logit head -----
    x3 = x.reshape(B, S, H)                                       # row-split: free
    if avg_pool:
        # TODO(synk): matches the module (mean over all positions incl. padding),
        # not a masked mean.
        pooled = jnp.mean(x3, axis=1)                             # (B, H)
    else:
        pooled = x3[:, 0, :]                                      # CLS rows, (B, H)

    ft = jnp.tanh(_mm(pooled, whead_ref[:, 0:POOLER_FT]) + vec(ROW_POOL_B, POOLER_FT))
    y = (_mm(ft, whead_ref[:, POOLER_FT:POOLER_FT + NUM_CLASSES])
         + vec(ROW_LOGIT_B, NUM_CLASSES))
    # single packed output store: [ft | logits]
    out_ref[...] = jnp.concatenate([ft, y], axis=-1)


# ---------------- parameters (deterministic, synthetic) ----------------------

def init_params(key):
    def nrm(k, shape, std=0.02):
        return (std * jax.random.normal(k, shape)).astype(jnp.float32)

    keys = iter(jax.random.split(key, 8 + 16 * N_LAYERS))

    # "ref" holds the plain, UNFOLDED parameters used by the pure-JAX reference.
    ref = {
        "emb_ln_g": 1.0 + nrm(next(keys), (1, H), 0.05),
        "emb_ln_b": nrm(next(keys), (1, H), 0.05),
        "pooler_w": nrm(next(keys), (H, POOLER_FT)),
        "pooler_b": nrm(next(keys), (1, POOLER_FT), 0.05),
        "logit_w": nrm(next(keys), (POOLER_FT, NUM_CLASSES)),
        "logit_b": nrm(next(keys), (1, NUM_CLASSES), 0.05),
    }
    emb_word = nrm(next(keys), (VOCAB, H))
    emb_pos = nrm(next(keys), (S, H))

    names = ("wq", "wk", "wv", "bq", "bk", "bv", "wo", "bo",
             "ln1_g", "ln1_b", "w1", "b1", "w2", "b2", "ln2_g", "ln2_b")
    per = {n: [] for n in names}
    for _ in range(N_LAYERS):
        per["wq"].append(nrm(next(keys), (H, H)))
        per["wk"].append(nrm(next(keys), (H, H)))
        per["wv"].append(nrm(next(keys), (H, H)))
        per["bq"].append(nrm(next(keys), (1, H), 0.05))
        per["bk"].append(nrm(next(keys), (1, H), 0.05))
        per["bv"].append(nrm(next(keys), (1, H), 0.05))
        per["wo"].append(nrm(next(keys), (H, H)))
        per["bo"].append(nrm(next(keys), (1, H), 0.05))
        per["ln1_g"].append(1.0 + nrm(next(keys), (1, H), 0.05))
        per["ln1_b"].append(nrm(next(keys), (1, H), 0.05))
        per["w1"].append(nrm(next(keys), (H, FFN)))
        per["b1"].append(nrm(next(keys), (1, FFN), 0.05))
        per["w2"].append(nrm(next(keys), (FFN, H)))
        per["b2"].append(nrm(next(keys), (1, H), 0.05))
        per["ln2_g"].append(1.0 + nrm(next(keys), (1, H), 0.05))
        per["ln2_b"].append(nrm(next(keys), (1, H), 0.05))
    ref.update({n: jnp.stack(v) for n, v in per.items()})

    # ---- kernel-ready packed parameters -------------------------------------
    # Fold 1/sqrt(Dh) into BOTH the Q weights and the Q bias (valid for any bias).
    wqkv = jnp.stack([
        jnp.concatenate([ref["wq"][l] * ATT_SCALE, ref["wk"][l], ref["wv"][l]], axis=1)
        for l in range(N_LAYERS)]).astype(jnp.bfloat16)                   # (L, H, 3H)
    whead = jnp.concatenate([ref["pooler_w"], ref["logit_w"]],
                            axis=1).astype(jnp.bfloat16)                  # (H, H+NC)

    def pad_row(v):
        v = jnp.asarray(v, jnp.float32).reshape(-1)
        return jnp.pad(v, (0, VEC_W - v.shape[0]))

    rows = [ref["emb_ln_g"], ref["emb_ln_b"], ref["pooler_b"], ref["logit_b"]]
    for l in range(N_LAYERS):
        bqkv = jnp.concatenate([ref["bq"][l] * ATT_SCALE, ref["bk"][l], ref["bv"][l]],
                               axis=1)
        rows += [bqkv, ref["bo"][l], ref["b1"][l], ref["b2"][l],
                 ref["ln1_g"][l], ref["ln1_b"][l], ref["ln2_g"][l], ref["ln2_b"][l]]
    vecs = jnp.stack([pad_row(r) for r in rows])       # (4 + 8*L, 128) lane-dense f32

    return {
        "emb_word": emb_word, "emb_pos": emb_pos,
        "vecs": vecs, "wqkv": wqkv,
        "wo": ref["wo"].astype(jnp.bfloat16),
        "w1": ref["w1"].astype(jnp.bfloat16),
        "w2": ref["w2"].astype(jnp.bfloat16),
        "whead": whead,
        "ref": ref,
    }


# ---------------- forward wrapper (mirrors Transformer.forward, nb_layers==1) -

def _embed_inputs(tokens, params):
    """Embedding gather + position add (XLA glue on a ~2 KB array) and mask bias."""
    Bb, Ss = tokens.shape
    x0 = params["emb_word"][tokens] + params["emb_pos"][None, :Ss, :]
    x0 = x0.reshape(Bb * Ss, H).astype(jnp.float32)
    # attention_mask = (tokens > 0) -> additive bias on key positions, (B, S)
    mask_bias = jnp.where(tokens > 0, 0.0, -1e9).astype(jnp.float32)
    return x0, mask_bias


@functools.partial(jax.jit, static_argnames=("avg_pool",))
def transformer_forward(tokens, params, avg_pool=False):
    x0, mask_bias = _embed_inputs(tokens, params)
    # Single fused pallas_call: 8 inputs (vs 20), 1 packed output, no scratch.
    # (When scaling to real BERT sizes: tile B*S rows with a 'parallel' grid axis
    #  for v7x's 2 TCs, stream per-layer weights via BlockSpec, and set
    #  pltpu.CompilerParams(vmem_limit_bytes=...) for v7x's 64 MiB VMEM.)
    out = pl.pallas_call(
        functools.partial(_fused_forward_kernel, avg_pool=avg_pool),
        out_shape=jax.ShapeDtypeStruct((B, POOLER_FT + NUM_CLASSES), jnp.float32),
        in_specs=[_VMEM] * 8,
        out_specs=_VMEM,
    )(x0, mask_bias, params["vecs"], params["wqkv"], params["wo"],
      params["w1"], params["w2"], params["whead"])
    ft = out[:, :POOLER_FT]
    y = out[:, POOLER_FT:POOLER_FT + NUM_CLASSES]
    return y, ft


# ---------------- pure-JAX reference (unfolded params, for correctness check) -

def reference_forward(tokens, params, avg_pool=False):
    ref = params["ref"]
    x0, mask_bias = _embed_inputs(tokens, params)
    x = _layernorm(x0, ref["emb_ln_g"], ref["emb_ln_b"])
    for l in range(N_LAYERS):
        q = _mm(x, ref["wq"][l]) + ref["bq"][l]
        k = _mm(x, ref["wk"][l]) + ref["bk"][l]
        v = _mm(x, ref["wv"][l]) + ref["bv"][l]
        rows = []
        for b in range(B):
            sl = slice(b * S, (b + 1) * S)
            heads = []
            for h in range(N_HEADS):
                hd = slice(h * HEAD_DIM, (h + 1) * HEAD_DIM)
                s = _mm(q[sl, hd], k[sl, hd].T) * ATT_SCALE + mask_bias[b:b + 1, :]
                p = jax.nn.softmax(s, axis=-1)
                heads.append(_mm(p, v[sl, hd]))
            rows.append(jnp.concatenate(heads, axis=-1))
        attn = _mm(jnp.concatenate(rows, axis=0), ref["wo"][l]) + ref["bo"][l]
        x = _layernorm(attn + x, ref["ln1_g"][l], ref["ln1_b"][l])
        h1 = _gelu(_mm(x, ref["w1"][l]) + ref["b1"][l])
        h2 = _mm(h1, ref["w2"][l]) + ref["b2"][l]
        x = _layernorm(h2 + x, ref["ln2_g"][l], ref["ln2_b"][l])
    hs = x.reshape(B, S, H)
    pooled = hs.mean(1) if avg_pool else hs[:, 0]
    ft = jnp.tanh(_mm(pooled, ref["pooler_w"]) + ref["pooler_b"])
    y = _mm(ft, ref["logit_w"]) + ref["logit_b"]
    return y, ft


# ---------------- main --------------------------------------------------------

if __name__ == "__main__":
    key = jax.random.PRNGKey(0)
    k_tok, k_par = jax.random.split(key)

    params = init_params(k_par)

    # tokens in [1, VOCAB); zero-out a tail to exercise the attention mask
    tokens = jax.random.randint(k_tok, (B, S), 1, VOCAB, dtype=jnp.int32)
    tokens = tokens.at[0, S - 2:].set(0)
    tokens = tokens.at[1, S - 3:].set(0)

    y, ft = transformer_forward(tokens, params, avg_pool=False)
    jax.block_until_ready((y, ft))

    y_ref, ft_ref = reference_forward(tokens, params, avg_pool=False)

    assert y.shape == (B, NUM_CLASSES) and ft.shape == (B, POOLER_FT)
    assert bool(jnp.all(jnp.isfinite(y))) and bool(jnp.all(jnp.isfinite(ft)))
    assert bool(jnp.allclose(y, y_ref, atol=2e-2, rtol=2e-2)), \
        f"logits mismatch: max abs diff {float(jnp.max(jnp.abs(y - y_ref)))}"
    assert bool(jnp.allclose(ft, ft_ref, atol=2e-2, rtol=2e-2)), \
        f"pooled-feature mismatch: max abs diff {float(jnp.max(jnp.abs(ft - ft_ref)))}"
    print("KERNEL_OK")
</pallas_src>

<mosaic_0001>
module attributes {stable_mosaic.version = 11 : i64} {
  func.func @_fused_forward_kernel(%arg0: memref<16x32xf32, #tpu.memory_space<vmem>>, %arg1: memref<2x8xf32, #tpu.memory_space<vmem>>, %arg2: memref<20x128xf32, #tpu.memory_space<vmem>>, %arg3: memref<2x32x96xbf16, #tpu.memory_space<vmem>>, %arg4: memref<2x32x32xbf16, #tpu.memory_space<vmem>>, %arg5: memref<2x32x64xbf16, #tpu.memory_space<vmem>>, %arg6: memref<2x64x32xbf16, #tpu.memory_space<vmem>>, %arg7: memref<32x35xbf16, #tpu.memory_space<vmem>>, %arg8: memref<2x35xf32, #tpu.memory_space<vmem>>) attributes {dimension_semantics = [], scalar_prefetch = 0 : i64, scratch_operands = 0 : i64, tpu.core_type = #tpu.core_type<tc>} {
    %c0 = arith.constant 0 : index
    %c0_0 = arith.constant 0 : index
    %0 = vector.load %arg1[%c0, %c0_0] : memref<2x8xf32, #tpu.memory_space<vmem>>, vector<2x8xf32>
    %c0_1 = arith.constant 0 : index
    %c0_2 = arith.constant 0 : index
    %1 = vector.load %arg0[%c0_1, %c0_2] : memref<16x32xf32, #tpu.memory_space<vmem>>, vector<16x32xf32>
    %c0_3 = arith.constant 0 : index
    %c0_4 = arith.constant 0 : index
    %2 = vector.load %arg2[%c0_3, %c0_4] : memref<20x128xf32, #tpu.memory_space<vmem>>, vector<1x32xf32>
    %c1 = arith.constant 1 : index
    %c0_5 = arith.constant 0 : index
    %3 = vector.load %arg2[%c1, %c0_5] : memref<20x128xf32, #tpu.memory_space<vmem>>, vector<1x32xf32>
    %cst = arith.constant dense<0.000000e+00> : vector<16xf32>
    %4 = vector.multi_reduction <add>, %1, %cst [1] : vector<16x32xf32> to vector<16xf32>
    %5 = vector.shape_cast %4 : vector<16xf32> to vector<16x1xf32>
    %cst_6 = arith.constant 3.200000e+01 : f32
    %6 = vector.broadcast %cst_6 : f32 to vector<16x1xf32>
    %7 = arith.divf %5, %6 : vector<16x1xf32>
    %8 = vector.broadcast %7 : vector<16x1xf32> to vector<16x32xf32>
    %9 = arith.subf %1, %8 : vector<16x32xf32>
    %10 = vector.broadcast %7 : vector<16x1xf32> to vector<16x32xf32>
    %11 = arith.subf %1, %10 : vector<16x32xf32>
    %12 = arith.mulf %9, %11 : vector<16x32xf32>
    %cst_7 = arith.constant dense<0.000000e+00> : vector<16xf32>
    %13 = vector.multi_reduction <add>, %12, %cst_7 [1] : vector<16x32xf32> to vector<16xf32>
    %14 = vector.shape_cast %13 : vector<16xf32> to vector<16x1xf32>
    %cst_8 = arith.constant 3.200000e+01 : f32
    %15 = vector.broadcast %cst_8 : f32 to vector<16x1xf32>
    %16 = arith.divf %14, %15 : vector<16x1xf32>
    %17 = vector.broadcast %7 : vector<16x1xf32> to vector<16x32xf32>
    %18 = arith.subf %1, %17 : vector<16x32xf32>
    %cst_9 = arith.constant 9.99999996E-13 : f32
    %19 = vector.broadcast %cst_9 : f32 to vector<16x1xf32>
    %20 = arith.addf %16, %19 : vector<16x1xf32>
    %21 = math.rsqrt %20 : vector<16x1xf32>
    %22 = vector.broadcast %21 : vector<16x1xf32> to vector<16x32xf32>
    %23 = arith.mulf %18, %22 : vector<16x32xf32>
    %24 = vector.broadcast %2 : vector<1x32xf32> to vector<16x32xf32>
    %25 = arith.mulf %23, %24 : vector<16x32xf32>
    %26 = vector.broadcast %3 : vector<1x32xf32> to vector<16x32xf32>
    %27 = arith.addf %25, %26 : vector<16x32xf32>
    %c0_10 = arith.constant 0 : index
    %c0_11 = arith.constant 0 : index
    %c0_12 = arith.constant 0 : index
    %28 = vector.load %arg3[%c0_10, %c0_11, %c0_12] : memref<2x32x96xbf16, #tpu.memory_space<vmem>>, vector<1x32x96xbf16>
    %29 = vector.shape_cast %28 : vector<1x32x96xbf16> to vector<32x96xbf16>
    %30 = arith.truncf %27 : vector<16x32xf32> to vector<16x32xbf16>
    %cst_13 = arith.constant dense<0.000000e+00> : vector<16x96xf32>
    %31 = tpu.matmul %30, %29, %cst_13 {dimension_numbers = #tpu.dot_dimension_numbers<[1], [0], [0], [1], [0, 0, 1, 1], [], []>} : vector<16x32xbf16>, vector<32x96xbf16>, vector<16x96xf32> -> vector<16x96xf32>
    %c4 = arith.constant 4 : index
    %c0_14 = arith.constant 0 : index
    %32 = vector.load %arg2[%c4, %c0_14] : memref<20x128xf32, #tpu.memory_space<vmem>>, vector<1x96xf32>
    %33 = vector.broadcast %32 : vector<1x96xf32> to vector<16x96xf32>
    %34 = arith.addf %31, %33 : vector<16x96xf32>
    %35 = arith.truncf %34 : vector<16x96xf32> to vector<16x96xbf16>
    %36 = vector.shape_cast %35 : vector<16x96xbf16> to vector<2x8x96xbf16>
    %37 = vector.extract_strided_slice %36 {offsets = [0, 0, 0], sizes = [2, 8, 16], strides = [1, 1, 1]} : vector<2x8x96xbf16> to vector<2x8x16xbf16>
    %38 = vector.extract_strided_slice %36 {offsets = [0, 0, 32], sizes = [2, 8, 16], strides = [1, 1, 1]} : vector<2x8x96xbf16> to vector<2x8x16xbf16>
    %39 = vector.extract_strided_slice %36 {offsets = [0, 0, 64], sizes = [2, 8, 16], strides = [1, 1, 1]} : vector<2x8x96xbf16> to vector<2x8x16xbf16>
    "tpu.trace_start"() <{level = 10 : i32, message = "bqd,bkd->bqk"}> : () -> ()
    %cst_15 = arith.constant dense<0.000000e+00> : vector<2x8x8xf32>
    %40 = tpu.matmul %37, %38, %cst_15 {dimension_numbers = #tpu.dot_dimension_numbers<[2], [2], [1], [1], [0, 0, 0, 1, 1, 1], [0], [0]>} : vector<2x8x16xbf16>, vector<2x8x16xbf16>, vector<2x8x8xf32> -> vector<2x8x8xf32>
    "tpu.trace_stop"() : () -> ()
    %41 = vector.shape_cast %0 : vector<2x8xf32> to vector<2x1x8xf32>
    %42 = vector.broadcast %41 : vector<2x1x8xf32> to vector<2x8x8xf32>
    %43 = arith.addf %40, %42 : vector<2x8x8xf32>
    %cst_16 = arith.constant dense<0xFF800000> : vector<2x8xf32>
    %44 = vector.multi_reduction <maximumf>, %43, %cst_16 [2] : vector<2x8x8xf32> to vector<2x8xf32>
    %45 = vector.shape_cast %44 : vector<2x8xf32> to vector<2x8x1xf32>
    %46 = vector.broadcast %45 : vector<2x8x1xf32> to vector<2x8x8xf32>
    %47 = arith.subf %43, %46 : vector<2x8x8xf32>
    %48 = math.exp %47 : vector<2x8x8xf32>
    %cst_17 = arith.constant dense<0.000000e+00> : vector<2x8xf32>
    %49 = vector.multi_reduction <add>, %48, %cst_17 [2] : vector<2x8x8xf32> to vector<2x8xf32>
    %50 = vector.shape_cast %49 : vector<2x8xf32> to vector<2x8x1xf32>
    %51 = tpu.reciprocal %50 {approx = true} : vector<2x8x1xf32> -> vector<2x8x1xf32>
    %52 = vector.broadcast %51 : vector<2x8x1xf32> to vector<2x8x8xf32>
    %53 = arith.mulf %48, %52 : vector<2x8x8xf32>
    %54 = arith.truncf %53 : vector<2x8x8xf32> to vector<2x8x8xbf16>
    "tpu.trace_start"() <{level = 10 : i32, message = "bqk,bkd->bqd"}> : () -> ()
    %cst_18 = arith.constant dense<0.000000e+00> : vector<2x8x16xf32>
    %55 = tpu.matmul %54, %39, %cst_18 {dimension_numbers = #tpu.dot_dimension_numbers<[2], [1], [1], [2], [0, 0, 0, 1, 1, 2], [0], [0]>} : vector<2x8x8xbf16>, vector<2x8x16xbf16>, vector<2x8x16xf32> -> vector<2x8x16xf32>
    "tpu.trace_stop"() : () -> ()
    %56 = vector.extract_strided_slice %36 {offsets = [0, 0, 16], sizes = [2, 8, 16], strides = [1, 1, 1]} : vector<2x8x96xbf16> to vector<2x8x16xbf16>
    %57 = vector.extract_strided_slice %36 {offsets = [0, 0, 48], sizes = [2, 8, 16], strides = [1, 1, 1]} : vector<2x8x96xbf16> to vector<2x8x16xbf16>
    %58 = vector.extract_strided_slice %36 {offsets = [0, 0, 80], sizes = [2, 8, 16], strides = [1, 1, 1]} : vector<2x8x96xbf16> to vector<2x8x16xbf16>
    "tpu.trace_start"() <{level = 10 : i32, message = "bqd,bkd->bqk"}> : () -> ()
    %cst_19 = arith.constant dense<0.000000e+00> : vector<2x8x8xf32>
    %59 = tpu.matmul %56, %57, %cst_19 {dimension_numbers = #tpu.dot_dimension_numbers<[2], [2], [1], [1], [0, 0, 0, 1, 1, 1], [0], [0]>} : vector<2x8x16xbf16>, vector<2x8x16xbf16>, vector<2x8x8xf32> -> vector<2x8x8xf32>
    "tpu.trace_stop"() : () -> ()
    %60 = vector.shape_cast %0 : vector<2x8xf32> to vector<2x1x8xf32>
    %61 = vector.broadcast %60 : vector<2x1x8xf32> to vector<2x8x8xf32>
    %62 = arith.addf %59, %61 : vector<2x8x8xf32>
    %cst_20 = arith.constant dense<0xFF800000> : vector<2x8xf32>
    %63 = vector.multi_reduction <maximumf>, %62, %cst_20 [2] : vector<2x8x8xf32> to vector<2x8xf32>
    %64 = vector.shape_cast %63 : vector<2x8xf32> to vector<2x8x1xf32>
    %65 = vector.broadcast %64 : vector<2x8x1xf32> to vector<2x8x8xf32>
    %66 = arith.subf %62, %65 : vector<2x8x8xf32>
    %67 = math.exp %66 : vector<2x8x8xf32>
    %cst_21 = arith.constant dense<0.000000e+00> : vector<2x8xf32>
    %68 = vector.multi_reduction <add>, %67, %cst_21 [2] : vector<2x8x8xf32> to vector<2x8xf32>
    %69 = vector.shape_cast %68 : vector<2x8xf32> to vector<2x8x1xf32>
    %70 = tpu.reciprocal %69 {approx = true} : vector<2x8x1xf32> -> vector<2x8x1xf32>
    %71 = vector.broadcast %70 : vector<2x8x1xf32> to vector<2x8x8xf32>
    %72 = arith.mulf %67, %71 : vector<2x8x8xf32>
    %73 = arith.truncf %72 : vector<2x8x8xf32> to vector<2x8x8xbf16>
    "tpu.trace_start"() <{level = 10 : i32, message = "bqk,bkd->bqd"}> : () -> ()
    %cst_22 = arith.constant dense<0.000000e+00> : vector<2x8x16xf32>
    %74 = tpu.matmul %73, %58, %cst_22 {dimension_numbers = #tpu.dot_dimension_numbers<[2], [1], [1], [2], [0, 0, 0, 1, 1, 2], [0], [0]>} : vector<2x8x8xbf16>, vector<2x8x16xbf16>, vector<2x8x16xf32> -> vector<2x8x16xf32>
    "tpu.trace_stop"() : () -> ()
    %75 = tpu.concatenate %55, %74 in 2 : vector<2x8x16xf32>, vector<2x8x16xf32> -> vector<2x8x32xf32>
    %76 = vector.shape_cast %75 : vector<2x8x32xf32> to vector<16x32xf32>
    %c0_23 = arith.constant 0 : index
    %c0_24 = arith.constant 0 : index
    %c0_25 = arith.constant 0 : index
    %77 = vector.load %arg4[%c0_23, %c0_24, %c0_25] : memref<2x32x32xbf16, #tpu.memory_space<vmem>>, vector<1x32x32xbf16>
    %78 = vector.shape_cast %77 : vector<1x32x32xbf16> to vector<32x32xbf16>
    %79 = arith.truncf %76 : vector<16x32xf32> to vector<16x32xbf16>
    %cst_26 = arith.constant dense<0.000000e+00> : vector<16x32xf32>
    %80 = tpu.matmul %79, %78, %cst_26 {dimension_numbers = #tpu.dot_dimension_numbers<[1], [0], [0], [1], [0, 0, 1, 1], [], []>} : vector<16x32xbf16>, vector<32x32xbf16>, vector<16x32xf32> -> vector<16x32xf32>
    %c5 = arith.constant 5 : index
    %c0_27 = arith.constant 0 : index
    %81 = vector.load %arg2[%c5, %c0_27] : memref<20x128xf32, #tpu.memory_space<vmem>>, vector<1x32xf32>
    %82 = vector.broadcast %81 : vector<1x32xf32> to vector<16x32xf32>
    %83 = arith.addf %80, %82 : vector<16x32xf32>
    %84 = arith.addf %83, %27 : vector<16x32xf32>
    %c8 = arith.constant 8 : index
    %c0_28 = arith.constant 0 : index
    %85 = vector.load %arg2[%c8, %c0_28] : memref<20x128xf32, #tpu.memory_space<vmem>>, vector<1x32xf32>
    %c9 = arith.constant 9 : index
    %c0_29 = arith.constant 0 : index
    %86 = vector.load %arg2[%c9, %c0_29] : memref<20x128xf32, #tpu.memory_space<vmem>>, vector<1x32xf32>
    %cst_30 = arith.constant dense<0.000000e+00> : vector<16xf32>
    %87 = vector.multi_reduction <add>, %84, %cst_30 [1] : vector<16x32xf32> to vector<16xf32>
    %88 = vector.shape_cast %87 : vector<16xf32> to vector<16x1xf32>
    %cst_31 = arith.constant 3.200000e+01 : f32
    %89 = vector.broadcast %cst_31 : f32 to vector<16x1xf32>
    %90 = arith.divf %88, %89 : vector<16x1xf32>
    %91 = vector.broadcast %90 : vector<16x1xf32> to vector<16x32xf32>
    %92 = arith.subf %84, %91 : vector<16x32xf32>
    %93 = vector.broadcast %90 : vector<16x1xf32> to vector<16x32xf32>
    %94 = arith.subf %84, %93 : vector<16x32xf32>
    %95 = arith.mulf %92, %94 : vector<16x32xf32>
    %cst_32 = arith.constant dense<0.000000e+00> : vector<16xf32>
    %96 = vector.multi_reduction <add>, %95, %cst_32 [1] : vector<16x32xf32> to vector<16xf32>
    %97 = vector.shape_cast %96 : vector<16xf32> to vector<16x1xf32>
    %cst_33 = arith.constant 3.200000e+01 : f32
    %98 = vector.broadcast %cst_33 : f32 to vector<16x1xf32>
    %99 = arith.divf %97, %98 : vector<16x1xf32>
    %100 = vector.broadcast %90 : vector<16x1xf32> to vector<16x32xf32>
    %101 = arith.subf %84, %100 : vector<16x32xf32>
    %cst_34 = arith.constant 9.99999996E-13 : f32
    %102 = vector.broadcast %cst_34 : f32 to vector<16x1xf32>
    %103 = arith.addf %99, %102 : vector<16x1xf32>
    %104 = math.rsqrt %103 : vector<16x1xf32>
    %105 = vector.broadcast %104 : vector<16x1xf32> to vector<16x32xf32>
    %106 = arith.mulf %101, %105 : vector<16x32xf32>
    %107 = vector.broadcast %85 : vector<1x32xf32> to vector<16x32xf32>
    %108 = arith.mulf %106, %107 : vector<16x32xf32>
    %109 = vector.broadcast %86 : vector<1x32xf32> to vector<16x32xf32>
    %110 = arith.addf %108, %109 : vector<16x32xf32>
    %c0_35 = arith.constant 0 : index
    %c0_36 = arith.constant 0 : index
    %c0_37 = arith.constant 0 : index
    %111 = vector.load %arg5[%c0_35, %c0_36, %c0_37] : memref<2x32x64xbf16, #tpu.memory_space<vmem>>, vector<1x32x64xbf16>
    %112 = vector.shape_cast %111 : vector<1x32x64xbf16> to vector<32x64xbf16>
    %113 = arith.truncf %110 : vector<16x32xf32> to vector<16x32xbf16>
    %cst_38 = arith.constant dense<0.000000e+00> : vector<16x64xf32>
    %114 = tpu.matmul %113, %112, %cst_38 {dimension_numbers = #tpu.dot_dimension_numbers<[1], [0], [0], [1], [0, 0, 1, 1], [], []>} : vector<16x32xbf16>, vector<32x64xbf16>, vector<16x64xf32> -> vector<16x64xf32>
    %c6 = arith.constant 6 : index
    %c0_39 = arith.constant 0 : index
    %115 = vector.load %arg2[%c6, %c0_39] : memref<20x128xf32, #tpu.memory_space<vmem>>, vector<1x64xf32>
    %116 = vector.broadcast %115 : vector<1x64xf32> to vector<16x64xf32>
    %117 = arith.addf %114, %116 : vector<16x64xf32>
    %cst_40 = arith.constant 5.000000e-01 : f32
    %118 = vector.broadcast %cst_40 : f32 to vector<16x64xf32>
    %119 = arith.mulf %118, %117 : vector<16x64xf32>
    %cst_41 = arith.constant 4.471500e-02 : f32
    %120 = vector.broadcast %cst_41 : f32 to vector<16x64xf32>
    %121 = arith.mulf %120, %117 : vector<16x64xf32>
    %122 = arith.mulf %121, %117 : vector<16x64xf32>
    %123 = arith.mulf %122, %117 : vector<16x64xf32>
    %124 = arith.addf %117, %123 : vector<16x64xf32>
    %cst_42 = arith.constant 0.797884583 : f32
    %125 = vector.broadcast %cst_42 : f32 to vector<16x64xf32>
    %126 = arith.mulf %125, %124 : vector<16x64xf32>
    %127 = math.tanh %126 : vector<16x64xf32>
    %cst_43 = arith.constant 1.000000e+00 : f32
    %128 = vector.broadcast %cst_43 : f32 to vector<16x64xf32>
    %129 = arith.addf %128, %127 : vector<16x64xf32>
    %130 = arith.mulf %119, %129 : vector<16x64xf32>
    %c0_44 = arith.constant 0 : index
    %c0_45 = arith.constant 0 : index
    %c0_46 = arith.constant 0 : index
    %131 = vector.load %arg6[%c0_44, %c0_45, %c0_46] : memref<2x64x32xbf16, #tpu.memory_space<vmem>>, vector<1x64x32xbf16>
    %132 = vector.shape_cast %131 : vector<1x64x32xbf16> to vector<64x32xbf16>
    %133 = arith.truncf %130 : vector<16x64xf32> to vector<16x64xbf16>
    %cst_47 = arith.constant dense<0.000000e+00> : vector<16x32xf32>
    %134 = tpu.matmul %133, %132, %cst_47 {dimension_numbers = #tpu.dot_dimension_numbers<[1], [0], [0], [1], [0, 0, 1, 1], [], []>} : vector<16x64xbf16>, vector<64x32xbf16>, vector<16x32xf32> -> vector<16x32xf32>
    %c7 = arith.constant 7 : index
    %c0_48 = arith.constant 0 : index
    %135 = vector.load %arg2[%c7, %c0_48] : memref<20x128xf32, #tpu.memory_space<vmem>>, vector<1x32xf32>
    %136 = vector.broadcast %135 : vector<1x32xf32> to vector<16x32xf32>
    %137 = arith.addf %134, %136 : vector<16x32xf32>
    %138 = arith.addf %137, %110 : vector<16x32xf32>
    %c10 = arith.constant 10 : index
    %c0_49 = arith.constant 0 : index
    %139 = vector.load %arg2[%c10, %c0_49] : memref<20x128xf32, #tpu.memory_space<vmem>>, vector<1x32xf32>
    %c11 = arith.constant 11 : index
    %c0_50 = arith.constant 0 : index
    %140 = vector.load %arg2[%c11, %c0_50] : memref<20x128xf32, #tpu.memory_space<vmem>>, vector<1x32xf32>
    %cst_51 = arith.constant dense<0.000000e+00> : vector<16xf32>
    %141 = vector.multi_reduction <add>, %138, %cst_51 [1] : vector<16x32xf32> to vector<16xf32>
    %142 = vector.shape_cast %141 : vector<16xf32> to vector<16x1xf32>
    %cst_52 = arith.constant 3.200000e+01 : f32
    %143 = vector.broadcast %cst_52 : f32 to vector<16x1xf32>
    %144 = arith.divf %142, %143 : vector<16x1xf32>
    %145 = vector.broadcast %144 : vector<16x1xf32> to vector<16x32xf32>
    %146 = arith.subf %138, %145 : vector<16x32xf32>
    %147 = vector.broadcast %144 : vector<16x1xf32> to vector<16x32xf32>
    %148 = arith.subf %138, %147 : vector<16x32xf32>
    %149 = arith.mulf %146, %148 : vector<16x32xf32>
    %cst_53 = arith.constant dense<0.000000e+00> : vector<16xf32>
    %150 = vector.multi_reduction <add>, %149, %cst_53 [1] : vector<16x32xf32> to vector<16xf32>
    %151 = vector.shape_cast %150 : vector<16xf32> to vector<16x1xf32>
    %cst_54 = arith.constant 3.200000e+01 : f32
    %152 = vector.broadcast %cst_54 : f32 to vector<16x1xf32>
    %153 = arith.divf %151, %152 : vector<16x1xf32>
    %154 = vector.broadcast %144 : vector<16x1xf32> to vector<16x32xf32>
    %155 = arith.subf %138, %154 : vector<16x32xf32>
    %cst_55 = arith.constant 9.99999996E-13 : f32
    %156 = vector.broadcast %cst_55 : f32 to vector<16x1xf32>
    %157 = arith.addf %153, %156 : vector<16x1xf32>
    %158 = math.rsqrt %157 : vector<16x1xf32>
    %159 = vector.broadcast %158 : vector<16x1xf32> to vector<16x32xf32>
    %160 = arith.mulf %155, %159 : vector<16x32xf32>
    %161 = vector.broadcast %139 : vector<1x32xf32> to vector<16x32xf32>
    %162 = arith.mulf %160, %161 : vector<16x32xf32>
    %163 = vector.broadcast %140 : vector<1x32xf32> to vector<16x32xf32>
    %164 = arith.addf %162, %163 : vector<16x32xf32>
    %c1_56 = arith.constant 1 : index
    %c0_57 = arith.constant 0 : index
    %c0_58 = arith.constant 0 : index
    %165 = vector.load %arg3[%c1_56, %c0_57, %c0_58] : memref<2x32x96xbf16, #tpu.memory_space<vmem>>, vector<1x32x96xbf16>
    %166 = vector.shape_cast %165 : vector<1x32x96xbf16> to vector<32x96xbf16>
    %167 = arith.truncf %164 : vector<16x32xf32> to vector<16x32xbf16>
    %cst_59 = arith.constant dense<0.000000e+00> : vector<16x96xf32>
    %168 = tpu.matmul %167, %166, %cst_59 {dimension_numbers = #tpu.dot_dimension_numbers<[1], [0], [0], [1], [0, 0, 1, 1], [], []>} : vector<16x32xbf16>, vector<32x96xbf16>, vector<16x96xf32> -> vector<16x96xf32>
    %c12 = arith.constant 12 : index
    %c0_60 = arith.constant 0 : index
    %169 = vector.load %arg2[%c12, %c0_60] : memref<20x128xf32, #tpu.memory_space<vmem>>, vector<1x96xf32>
    %170 = vector.broadcast %169 : vector<1x96xf32> to vector<16x96xf32>
    %171 = arith.addf %168, %170 : vector<16x96xf32>
    %172 = arith.truncf %171 : vector<16x96xf32> to vector<16x96xbf16>
    %173 = vector.shape_cast %172 : vector<16x96xbf16> to vector<2x8x96xbf16>
    %174 = vector.extract_strided_slice %173 {offsets = [0, 0, 0], sizes = [2, 8, 16], strides = [1, 1, 1]} : vector<2x8x96xbf16> to vector<2x8x16xbf16>
    %175 = vector.extract_strided_slice %173 {offsets = [0, 0, 32], sizes = [2, 8, 16], strides = [1, 1, 1]} : vector<2x8x96xbf16> to vector<2x8x16xbf16>
    %176 = vector.extract_strided_slice %173 {offsets = [0, 0, 64], sizes = [2, 8, 16], strides = [1, 1, 1]} : vector<2x8x96xbf16> to vector<2x8x16xbf16>
    "tpu.trace_start"() <{level = 10 : i32, message = "bqd,bkd->bqk"}> : () -> ()
    %cst_61 = arith.constant dense<0.000000e+00> : vector<2x8x8xf32>
    %177 = tpu.matmul %174, %175, %cst_61 {dimension_numbers = #tpu.dot_dimension_numbers<[2], [2], [1], [1], [0, 0, 0, 1, 1, 1], [0], [0]>} : vector<2x8x16xbf16>, vector<2x8x16xbf16>, vector<2x8x8xf32> -> vector<2x8x8xf32>
    "tpu.trace_stop"() : () -> ()
    %178 = vector.shape_cast %0 : vector<2x8xf32> to vector<2x1x8xf32>
    %179 = vector.broadcast %178 : vector<2x1x8xf32> to vector<2x8x8xf32>
    %180 = arith.addf %177, %179 : vector<2x8x8xf32>
    %cst_62 = arith.constant dense<0xFF800000> : vector<2x8xf32>
    %181 = vector.multi_reduction <maximumf>, %180, %cst_62 [2] : vector<2x8x8xf32> to vector<2x8xf32>
    %182 = vector.shape_cast %181 : vector<2x8xf32> to vector<2x8x1xf32>
    %183 = vector.broadcast %182 : vector<2x8x1xf32> to vector<2x8x8xf32>
    %184 = arith.subf %180, %183 : vector<2x8x8xf32>
    %185 = math.exp %184 : vector<2x8x8xf32>
    %cst_63 = arith.constant dense<0.000000e+00> : vector<2x8xf32>
    %186 = vector.multi_reduction <add>, %185, %cst_63 [2] : vector<2x8x8xf32> to vector<2x8xf32>
    %187 = vector.shape_cast %186 : vector<2x8xf32> to vector<2x8x1xf32>
    %188 = tpu.reciprocal %187 {approx = true} : vector<2x8x1xf32> -> vector<2x8x1xf32>
    %189 = vector.broadcast %188 : vector<2x8x1xf32> to vector<2x8x8xf32>
    %190 = arith.mulf %185, %189 : vector<2x8x8xf32>
    %191 = arith.truncf %190 : vector<2x8x8xf32> to vector<2x8x8xbf16>
    "tpu.trace_start"() <{level = 10 : i32, message = "bqk,bkd->bqd"}> : () -> ()
    %cst_64 = arith.constant dense<0.000000e+00> : vector<2x8x16xf32>
    %192 = tpu.matmul %191, %176, %cst_64 {dimension_numbers = #tpu.dot_dimension_numbers<[2], [1], [1], [2], [0, 0, 0, 1, 1, 2], [0], [0]>} : vector<2x8x8xbf16>, vector<2x8x16xbf16>, vector<2x8x16xf32> -> vector<2x8x16xf32>
    "tpu.trace_stop"() : () -> ()
    %193 = vector.extract_strided_slice %173 {offsets = [0, 0, 16], sizes = [2, 8, 16], strides = [1, 1, 1]} : vector<2x8x96xbf16> to vector<2x8x16xbf16>
    %194 = vector.extract_strided_slice %173 {offsets = [0, 0, 48], sizes = [2, 8, 16], strides = [1, 1, 1]} : vector<2x8x96xbf16> to vector<2x8x16xbf16>
    %195 = vector.extract_strided_slice %173 {offsets = [0, 0, 80], sizes = [2, 8, 16], strides = [1, 1, 1]} : vector<2x8x96xbf16> to vector<2x8x16xbf16>
    "tpu.trace_start"() <{level = 10 : i32, message = "bqd,bkd->bqk"}> : () -> ()
    %cst_65 = arith.constant dense<0.000000e+00> : vector<2x8x8xf32>
    %196 = tpu.matmul %193, %194, %cst_65 {dimension_numbers = #tpu.dot_dimension_numbers<[2], [2], [1], [1], [0, 0, 0, 1, 1, 1], [0], [0]>} : vector<2x8x16xbf16>, vector<2x8x16xbf16>, vector<2x8x8xf32> -> vector<2x8x8xf32>
    "tpu.trace_stop"() : () -> ()
    %197 = vector.shape_cast %0 : vector<2x8xf32> to vector<2x1x8xf32>
    %198 = vector.broadcast %197 : vector<2x1x8xf32> to vector<2x8x8xf32>
    %199 = arith.addf %196, %198 : vector<2x8x8xf32>
    %cst_66 = arith.constant dense<0xFF800000> : vector<2x8xf32>
    %200 = vector.multi_reduction <maximumf>, %199, %cst_66 [2] : vector<2x8x8xf32> to vector<2x8xf32>
    %201 = vector.shape_cast %200 : vector<2x8xf32> to vector<2x8x1xf32>
    %202 = vector.broadcast %201 : vector<2x8x1xf32> to vector<2x8x8xf32>
    %203 = arith.subf %199, %202 : vector<2x8x8xf32>
    %204 = math.exp %203 : vector<2x8x8xf32>
    %cst_67 = arith.constant dense<0.000000e+00> : vector<2x8xf32>
    %205 = vector.multi_reduction <add>, %204, %cst_67 [2] : vector<2x8x8xf32> to vector<2x8xf32>
    %206 = vector.shape_cast %205 : vector<2x8xf32> to vector<2x8x1xf32>
    %207 = tpu.reciprocal %206 {approx = true} : vector<2x8x1xf32> -> vector<2x8x1xf32>
    %208 = vector.broadcast %207 : vector<2x8x1xf32> to vector<2x8x8xf32>
    %209 = arith.mulf %204, %208 : vector<2x8x8xf32>
    %210 = arith.truncf %209 : vector<2x8x8xf32> to vector<2x8x8xbf16>
    "tpu.trace_start"() <{level = 10 : i32, message = "bqk,bkd->bqd"}> : () -> ()
    %cst_68 = arith.constant dense<0.000000e+00> : vector<2x8x16xf32>
    %211 = tpu.matmul %210, %195, %cst_68 {dimension_numbers = #tpu.dot_dimension_numbers<[2], [1], [1], [2], [0, 0, 0, 1, 1, 2], [0], [0]>} : vector<2x8x8xbf16>, vector<2x8x16xbf16>, vector<2x8x16xf32> -> vector<2x8x16xf32>
    "tpu.trace_stop"() : () -> ()
    %212 = tpu.concatenate %192, %211 in 2 : vector<2x8x16xf32>, vector<2x8x16xf32> -> vector<2x8x32xf32>
    %213 = vector.shape_cast %212 : vector<2x8x32xf32> to vector<16x32xf32>
    %c1_69 = arith.constant 1 : index
    %c0_70 = arith.constant 0 : index
    %c0_71 = arith.constant 0 : index
    %214 = vector.load %arg4[%c1_69, %c0_70, %c0_71] : memref<2x32x32xbf16, #tpu.memory_space<vmem>>, vector<1x32x32xbf16>
    %215 = vector.shape_cast %214 : vector<1x32x32xbf16> to vector<32x32xbf16>
    %216 = arith.truncf %213 : vector<16x32xf32> to vector<16x32xbf16>
    %cst_72 = arith.constant dense<0.000000e+00> : vector<16x32xf32>
    %217 = tpu.matmul %216, %215, %cst_72 {dimension_numbers = #tpu.dot_dimension_numbers<[1], [0], [0], [1], [0, 0, 1, 1], [], []>} : vector<16x32xbf16>, vector<32x32xbf16>, vector<16x32xf32> -> vector<16x32xf32>
    %c13 = arith.constant 13 : index
    %c0_73 = arith.constant 0 : index
    %218 = vector.load %arg2[%c13, %c0_73] : memref<20x128xf32, #tpu.memory_space<vmem>>, vector<1x32xf32>
    %219 = vector.broadcast %218 : vector<1x32xf32> to vector<16x32xf32>
    %220 = arith.addf %217, %219 : vector<16x32xf32>
    %221 = arith.addf %220, %164 : vector<16x32xf32>
    %c16 = arith.constant 16 : index
    %c0_74 = arith.constant 0 : index
    %222 = vector.load %arg2[%c16, %c0_74] : memref<20x128xf32, #tpu.memory_space<vmem>>, vector<1x32xf32>
    %c17 = arith.constant 17 : index
    %c0_75 = arith.constant 0 : index
    %223 = vector.load %arg2[%c17, %c0_75] : memref<20x128xf32, #tpu.memory_space<vmem>>, vector<1x32xf32>
    %cst_76 = arith.constant dense<0.000000e+00> : vector<16xf32>
    %224 = vector.multi_reduction <add>, %221, %cst_76 [1] : vector<16x32xf32> to vector<16xf32>
    %225 = vector.shape_cast %224 : vector<16xf32> to vector<16x1xf32>
    %cst_77 = arith.constant 3.200000e+01 : f32
    %226 = vector.broadcast %cst_77 : f32 to vector<16x1xf32>
    %227 = arith.divf %225, %226 : vector<16x1xf32>
    %228 = vector.broadcast %227 : vector<16x1xf32> to vector<16x32xf32>
    %229 = arith.subf %221, %228 : vector<16x32xf32>
    %230 = vector.broadcast %227 : vector<16x1xf32> to vector<16x32xf32>
    %231 = arith.subf %221, %230 : vector<16x32xf32>
    %232 = arith.mulf %229, %231 : vector<16x32xf32>
    %cst_78 = arith.constant dense<0.000000e+00> : vector<16xf32>
    %233 = vector.multi_reduction <add>, %232, %cst_78 [1] : vector<16x32xf32> to vector<16xf32>
    %234 = vector.shape_cast %233 : vector<16xf32> to vector<16x1xf32>
    %cst_79 = arith.constant 3.200000e+01 : f32
    %235 = vector.broadcast %cst_79 : f32 to vector<16x1xf32>
    %236 = arith.divf %234, %235 : vector<16x1xf32>
    %237 = vector.broadcast %227 : vector<16x1xf32> to vector<16x32xf32>
    %238 = arith.subf %221, %237 : vector<16x32xf32>
    %cst_80 = arith.constant 9.99999996E-13 : f32
    %239 = vector.broadcast %cst_80 : f32 to vector<16x1xf32>
    %240 = arith.addf %236, %239 : vector<16x1xf32>
    %241 = math.rsqrt %240 : vector<16x1xf32>
    %242 = vector.broadcast %241 : vector<16x1xf32> to vector<16x32xf32>
    %243 = arith.mulf %238, %242 : vector<16x32xf32>
    %244 = vector.broadcast %222 : vector<1x32xf32> to vector<16x32xf32>
    %245 = arith.mulf %243, %244 : vector<16x32xf32>
    %246 = vector.broadcast %223 : vector<1x32xf32> to vector<16x32xf32>
    %247 = arith.addf %245, %246 : vector<16x32xf32>
    %c1_81 = arith.constant 1 : index
    %c0_82 = arith.constant 0 : index
    %c0_83 = arith.constant 0 : index
    %248 = vector.load %arg5[%c1_81, %c0_82, %c0_83] : memref<2x32x64xbf16, #tpu.memory_space<vmem>>, vector<1x32x64xbf16>
    %249 = vector.shape_cast %248 : vector<1x32x64xbf16> to vector<32x64xbf16>
    %250 = arith.truncf %247 : vector<16x32xf32> to vector<16x32xbf16>
    %cst_84 = arith.constant dense<0.000000e+00> : vector<16x64xf32>
    %251 = tpu.matmul %250, %249, %cst_84 {dimension_numbers = #tpu.dot_dimension_numbers<[1], [0], [0], [1], [0, 0, 1, 1], [], []>} : vector<16x32xbf16>, vector<32x64xbf16>, vector<16x64xf32> -> vector<16x64xf32>
    %c14 = arith.constant 14 : index
    %c0_85 = arith.constant 0 : index
    %252 = vector.load %arg2[%c14, %c0_85] : memref<20x128xf32, #tpu.memory_space<vmem>>, vector<1x64xf32>
    %253 = vector.broadcast %252 : vector<1x64xf32> to vector<16x64xf32>
    %254 = arith.addf %251, %253 : vector<16x64xf32>
    %cst_86 = arith.constant 5.000000e-01 : f32
    %255 = vector.broadcast %cst_86 : f32 to vector<16x64xf32>
    %256 = arith.mulf %255, %254 : vector<16x64xf32>
    %cst_87 = arith.constant 4.471500e-02 : f32
    %257 = vector.broadcast %cst_87 : f32 to vector<16x64xf32>
    %258 = arith.mulf %257, %254 : vector<16x64xf32>
    %259 = arith.mulf %258, %254 : vector<16x64xf32>
    %260 = arith.mulf %259, %254 : vector<16x64xf32>
    %261 = arith.addf %254, %260 : vector<16x64xf32>
    %cst_88 = arith.constant 0.797884583 : f32
    %262 = vector.broadcast %cst_88 : f32 to vector<16x64xf32>
    %263 = arith.mulf %262, %261 : vector<16x64xf32>
    %264 = math.tanh %263 : vector<16x64xf32>
    %cst_89 = arith.constant 1.000000e+00 : f32
    %265 = vector.broadcast %cst_89 : f32 to vector<16x64xf32>
    %266 = arith.addf %265, %264 : vector<16x64xf32>
    %267 = arith.mulf %256, %266 : vector<16x64xf32>
    %c1_90 = arith.constant 1 : index
    %c0_91 = arith.constant 0 : index
    %c0_92 = arith.constant 0 : index
    %268 = vector.load %arg6[%c1_90, %c0_91, %c0_92] : memref<2x64x32xbf16, #tpu.memory_space<vmem>>, vector<1x64x32xbf16>
    %269 = vector.shape_cast %268 : vector<1x64x32xbf16> to vector<64x32xbf16>
    %270 = arith.truncf %267 : vector<16x64xf32> to vector<16x64xbf16>
    %cst_93 = arith.constant dense<0.000000e+00> : vector<16x32xf32>
    %271 = tpu.matmul %270, %269, %cst_93 {dimension_numbers = #tpu.dot_dimension_numbers<[1], [0], [0], [1], [0, 0, 1, 1], [], []>} : vector<16x64xbf16>, vector<64x32xbf16>, vector<16x32xf32> -> vector<16x32xf32>
    %c15 = arith.constant 15 : index
    %c0_94 = arith.constant 0 : index
    %272 = vector.load %arg2[%c15, %c0_94] : memref<20x128xf32, #tpu.memory_space<vmem>>, vector<1x32xf32>
    %273 = vector.broadcast %272 : vector<1x32xf32> to vector<16x32xf32>
    %274 = arith.addf %271, %273 : vector<16x32xf32>
    %275 = arith.addf %274, %247 : vector<16x32xf32>
    %c18 = arith.constant 18 : index
    %c0_95 = arith.constant 0 : index
    %276 = vector.load %arg2[%c18, %c0_95] : memref<20x128xf32, #tpu.memory_space<vmem>>, vector<1x32xf32>
    %c19 = arith.constant 19 : index
    %c0_96 = arith.constant 0 : index
    %277 = vector.load %arg2[%c19, %c0_96] : memref<20x128xf32, #tpu.memory_space<vmem>>, vector<1x32xf32>
    %cst_97 = arith.constant dense<0.000000e+00> : vector<16xf32>
    %278 = vector.multi_reduction <add>, %275, %cst_97 [1] : vector<16x32xf32> to vector<16xf32>
    %279 = vector.shape_cast %278 : vector<16xf32> to vector<16x1xf32>
    %cst_98 = arith.constant 3.200000e+01 : f32
    %280 = vector.broadcast %cst_98 : f32 to vector<16x1xf32>
    %281 = arith.divf %279, %280 : vector<16x1xf32>
    %282 = vector.broadcast %281 : vector<16x1xf32> to vector<16x32xf32>
    %283 = arith.subf %275, %282 : vector<16x32xf32>
    %284 = vector.broadcast %281 : vector<16x1xf32> to vector<16x32xf32>
    %285 = arith.subf %275, %284 : vector<16x32xf32>
    %286 = arith.mulf %283, %285 : vector<16x32xf32>
    %cst_99 = arith.constant dense<0.000000e+00> : vector<16xf32>
    %287 = vector.multi_reduction <add>, %286, %cst_99 [1] : vector<16x32xf32> to vector<16xf32>
    %288 = vector.shape_cast %287 : vector<16xf32> to vector<16x1xf32>
    %cst_100 = arith.constant 3.200000e+01 : f32
    %289 = vector.broadcast %cst_100 : f32 to vector<16x1xf32>
    %290 = arith.divf %288, %289 : vector<16x1xf32>
    %291 = vector.broadcast %281 : vector<16x1xf32> to vector<16x32xf32>
    %292 = arith.subf %275, %291 : vector<16x32xf32>
    %cst_101 = arith.constant 9.99999996E-13 : f32
    %293 = vector.broadcast %cst_101 : f32 to vector<16x1xf32>
    %294 = arith.addf %290, %293 : vector<16x1xf32>
    %295 = math.rsqrt %294 : vector<16x1xf32>
    %296 = vector.broadcast %295 : vector<16x1xf32> to vector<16x32xf32>
    %297 = arith.mulf %292, %296 : vector<16x32xf32>
    %298 = vector.broadcast %276 : vector<1x32xf32> to vector<16x32xf32>
    %299 = arith.mulf %297, %298 : vector<16x32xf32>
    %300 = vector.broadcast %277 : vector<1x32xf32> to vector<16x32xf32>
    %301 = arith.addf %299, %300 : vector<16x32xf32>
    %302 = vector.shape_cast %301 : vector<16x32xf32> to vector<2x8x32xf32>
    %303 = vector.extract_strided_slice %302 {offsets = [0, 0, 0], sizes = [2, 1, 32], strides = [1, 1, 1]} : vector<2x8x32xf32> to vector<2x1x32xf32>
    %304 = vector.shape_cast %303 : vector<2x1x32xf32> to vector<2x32xf32>
    %c0_102 = arith.constant 0 : index
    %c0_103 = arith.constant 0 : index
    %305 = vector.load %arg7[%c0_102, %c0_103] : memref<32x35xbf16, #tpu.memory_space<vmem>>, vector<32x32xbf16>
    %306 = arith.truncf %304 : vector<2x32xf32> to vector<2x32xbf16>
    %cst_104 = arith.constant dense<0.000000e+00> : vector<2x32xf32>
    %307 = tpu.matmul %306, %305, %cst_104 {dimension_numbers = #tpu.dot_dimension_numbers<[1], [0], [0], [1], [0, 0, 1, 1], [], []>} : vector<2x32xbf16>, vector<32x32xbf16>, vector<2x32xf32> -> vector<2x32xf32>
    %c2 = arith.constant 2 : index
    %c0_105 = arith.constant 0 : index
    %308 = vector.load %arg2[%c2, %c0_105] : memref<20x128xf32, #tpu.memory_space<vmem>>, vector<1x32xf32>
    %309 = vector.broadcast %308 : vector<1x32xf32> to vector<2x32xf32>
    %310 = arith.addf %307, %309 : vector<2x32xf32>
    %311 = math.tanh %310 : vector<2x32xf32>
    %c0_106 = arith.constant 0 : index
    %c32 = arith.constant 32 : index
    %312 = vector.load %arg7[%c0_106, %c32] : memref<32x35xbf16, #tpu.memory_space<vmem>>, vector<32x3xbf16>
    %313 = arith.truncf %311 : vector<2x32xf32> to vector<2x32xbf16>
    %cst_107 = arith.constant dense<0.000000e+00> : vector<2x3xf32>
    %314 = tpu.matmul %313, %312, %cst_107 {dimension_numbers = #tpu.dot_dimension_numbers<[1], [0], [0], [1], [0, 0, 1, 1], [], []>} : vector<2x32xbf16>, vector<32x3xbf16>, vector<2x3xf32> -> vector<2x3xf32>
    %c3 = arith.constant 3 : index
    %c0_108 = arith.constant 0 : index
    %315 = vector.load %arg2[%c3, %c0_108] : memref<20x128xf32, #tpu.memory_space<vmem>>, vector<1x3xf32>
    %316 = vector.broadcast %315 : vector<1x3xf32> to vector<2x3xf32>
    %317 = arith.addf %314, %316 : vector<2x3xf32>
    %318 = tpu.concatenate %311, %317 in 1 : vector<2x32xf32>, vector<2x3xf32> -> vector<2x35xf32>
    %c0_109 = arith.constant 0 : index
    %c0_110 = arith.constant 0 : index
    %319 = vector.load %arg8[%c0_109, %c0_110] : memref<2x35xf32, #tpu.memory_space<vmem>>, vector<2x35xf32>
    tpu.vector_store %arg8[%c0_109, %c0_110], %318 {strides = array<i32>} : memref<2x35xf32, #tpu.memory_space<vmem>>, vector<2x35xf32>,
    return
  }
}

</mosaic_0001>

<llo_original>
// kernel: transformer_forward.1
$region0: #{transformer_forward.1}
  #allocation0 [shape = 'u32[]', space=smem, size = 0x4, offset = 0x4, fixed_abs, tag = 'smem constant byte address 0x4 - core index']
  #allocation1 [shape = 'u32[144,128]{1,0:T(1,128)}', space=vmem, size = 0x12000, scoped, tag = 'internal scratch']
  %s0 = inlined_call_operand.vmem [shape: f32[16,32], index: 0, kind: input, shape index: {}]
  %s1 = inlined_call_operand.vmem [shape: f32[2,8], index: 1, kind: input, shape index: {}]
  %s2 = inlined_call_operand.vmem [shape: f32[20,128], index: 2, kind: input, shape index: {}]
  %s3 = inlined_call_operand.vmem [shape: bf16[2,32,96], index: 3, kind: input, shape index: {}]
  %s4 = inlined_call_operand.vmem [shape: bf16[2,32,32], index: 4, kind: input, shape index: {}]
  %s5 = inlined_call_operand.vmem [shape: bf16[2,32,64], index: 5, kind: input, shape index: {}]
  %s6 = inlined_call_operand.vmem [shape: bf16[2,64,32], index: 6, kind: input, shape index: {}]
  %s7 = inlined_call_operand.vmem [shape: bf16[32,35], index: 7, kind: input, shape index: {}]
  %s8 = inlined_call_operand.vmem [shape: f32[2,35], index: 8, kind: output, shape index: {}]
  %s9 = sld [smem:[#allocation0]]
  $region42: #{transformer_forward.1} parent=0
    _
  %s11 = ssub.s32 1, %s9
  %s12 = scalar_select 0, %s11, %s9
  // Predicated region
  $region2: #{transformer_forward.1} parent=0 // pred_check
    _
  $region3: #{transformer_forward.1} parent=0 // pred_check_branch
    %14 = sbr.rel (0) target = $region5
  $region4: #{transformer_forward.1} parent=0 // pred_region
    _
  $region5: #{transformer_forward.1} parent=0 // pred_fallthru
    _
  // Predicated region
  $region6: #{transformer_forward.1} parent=0 // pred_check
    _
  $region7: #{transformer_forward.1} parent=0 // pred_check_branch
    %16 = sbr.rel (0) target = $region9
  $region8: #{transformer_forward.1} parent=0 // pred_region
    _
  $region9: #{transformer_forward.1} parent=0 // pred_fallthru
    _
  // Predicated region
  $region10: #{transformer_forward.1} parent=0 // pred_check
    _
  $region11: #{transformer_forward.1} parent=0 // pred_check_branch
    %18 = sbr.rel (0) target = $region13
  $region12: #{transformer_forward.1} parent=0 // pred_region
    _
  $region13: #{transformer_forward.1} parent=0 // pred_fallthru
    _
  // Predicated region
  $region14: #{transformer_forward.1} parent=0 // pred_check
    _
  $region15: #{transformer_forward.1} parent=0 // pred_check_branch
    %20 = sbr.rel (0) target = $region17
  $region16: #{transformer_forward.1} parent=0 // pred_region
    _
  $region17: #{transformer_forward.1} parent=0 // pred_fallthru
    _
  // Predicated region
  $region18: #{transformer_forward.1} parent=0 // pred_check
    _
  $region19: #{transformer_forward.1} parent=0 // pred_check_branch
    %22 = sbr.rel (0) target = $region21
  $region20: #{transformer_forward.1} parent=0 // pred_region
    _
  $region21: #{transformer_forward.1} parent=0 // pred_fallthru
    _
  // Predicated region
  $region22: #{transformer_forward.1} parent=0 // pred_check
    _
  $region23: #{transformer_forward.1} parent=0 // pred_check_branch
    %24 = sbr.rel (0) target = $region25
  $region24: #{transformer_forward.1} parent=0 // pred_region
    _
  $region25: #{transformer_forward.1} parent=0 // pred_fallthru
    _
  // Predicated region
  $region26: #{transformer_forward.1} parent=0 // pred_check
    _
  $region27: #{transformer_forward.1} parent=0 // pred_check_branch
    %26 = sbr.rel (0) target = $region29
  $region28: #{transformer_forward.1} parent=0 // pred_region
    _
  $region29: #{transformer_forward.1} parent=0 // pred_fallthru
    _
  // Predicated region
  $region30: #{transformer_forward.1} parent=0 // pred_check
    _
  $region31: #{transformer_forward.1} parent=0 // pred_check_branch
    %28 = sbr.rel (0) target = $region33
  $region32: #{transformer_forward.1} parent=0 // pred_region
    _
  $region33: #{transformer_forward.1} parent=0 // pred_fallthru
    _
  %v30 = vld [vmem:[%s1] sm:$0x3]
  %v31 = vld [vmem:[%s0] sm:$0xff]
  %v32 = vld [vmem:[%s0 + $0x8] sm:$0xff]
  %v33 = vld [vmem:[%s2] sm:$0x1]
  %v34 = vld [vmem:[%s2 + $0x1] sm:$0x1]
  %vm35 = vcmask 261120
  %v36 = vsel %vm35, %v31, 0.0
  %37 = vadd.xlane.f32.xlu0 %v36
  %v38 = vpop.xlane.xlu0 %37
  %v39 = vsel %vm35, %v32, 0.0
  %40 = vadd.xlane.f32.xlu0 %v39
  %v41 = vpop.xlane.xlu0 %40
  %v42 = vrcp.pop 32.0
  %v43 = vmul.f32 %v38, %v42
  %v44 = vmul.f32 %v41, %v42
  %v45 = vsub.f32 %v31, %v43
  %v46 = vsub.f32 %v32, %v44
  %v47 = vmul.f32 %v45, %v45
  %v48 = vmul.f32 %v46, %v46
  %v49 = vsel %vm35, %v47, 0.0
  %50 = vadd.xlane.f32.xlu0 %v49
  %v51 = vpop.xlane.xlu0 %50
  %v52 = vsel %vm35, %v48, 0.0
  %53 = vadd.xlane.f32.xlu0 %v52
  %v54 = vpop.xlane.xlu0 %53
  %v55 = vmul.f32 %v51, %v42
  %v56 = vmul.f32 %v54, %v42
  %v57 = vadd.f32 %v55, 1e-12
  %v58 = vadd.f32 %v56, 1e-12
  %v59 = vrsqrt.pop %v57
  %v60 = vrsqrt.pop %v58
  %v61 = vmul.f32 %v45, %v59
  %v62 = vmul.f32 %v46, %v60
  %v63 = vlaneseq
  %v64 = vshrl.u32 %v63, 7
  %v65 = vsub.s32 0, %v64
  %v66 = vrot.slane %v33, %v65
  %v67 = vmul.f32 %v61, %v66
  %v68 = vmul.f32 %v62, %v66
  %v69 = vlaneseq
  %v70 = vshrl.u32 %v69, 7
  %v71 = vsub.s32 0, %v70
  %v72 = vrot.slane %v34, %v71
  %v73 = vadd.f32 %v67, %v72
  %v74 = vadd.f32 %v68, %v72
  %v75 = vld [vmem:[%s3] sm:$0xf]
  %v76 = vld [vmem:[%s3 + $0x4] sm:$0xf]
  %v77 = vld [vmem:[%s3 + $0x8] sm:$0xf]
  %v78 = vld [vmem:[%s3 + $0xc] sm:$0xf]
  %v79 = vpack.c.bf16 %v74, %v73
  %v80 = vld [vmem:[%s2 + $0x4] sm:$0x1]
  %v81 = vlaneseq
  %v82 = vshrl.u32 %v81, 7
  %v83 = vsub.s32 0, %v82
  %v84 = vrot.slane %v80, %v83
  %v89 = vunpack.c.l.b16 %v75
  %v90 = vunpack.c.l.b16 %v76
  %v91 = vunpack.c.l.b16 %v77
  %v92 = vunpack.c.l.b16 %v78
  %v93 = vpack.c.b16 %v90, %v89
  %v94 = vpack.c.b16 %v92, %v91
  %v98 = vsel %vm35, %v79, 0
  %100 = vmatprep.subr.bf16.mxu0 0
  %101 = vmatpush1.bf16.msra.mxu0 %v93
  %102 = vmatprep.subr.bf16.mxu0 0
  %103 = vmatpush1.bf16.msra.mxu0 %v94
  %104 = vmatprep.subr.bf16.mxu0 0
  %105 = vmatpush1.bf16.msra.mxu0 0
  %106 = vmatprep.subr.bf16.mxu0 0
  %107 = vmatpush1.bf16.msra.mxu0 0
  %108 = vmatprep.subr.bf16.mxu0 0
  %109 = vmatpush1.bf16.msra.mxu0 0
  %110 = vmatprep.subr.bf16.mxu0 0
  %111 = vmatpush1.bf16.msra.mxu0 0
  %112 = vmatprep.subr.bf16.mxu0 0
  %113 = vmatpush1.bf16.msra.mxu0 0
  %114 = vmatprep.subr.bf16.mxu0 0
  %115 = vmatpush1.bf16.msra.mxu0 0
  %116 = vmatprep.subr.bf16.mxu0 0
  %117 = vmatpush1.bf16.msra.mxu0 0
  %118 = vmatprep.subr.bf16.mxu0 0
  %119 = vmatpush1.bf16.msra.mxu0 0
  %120 = vmatprep.subr.bf16.mxu0 0
  %121 = vmatpush1.bf16.msra.mxu0 0
  %122 = vmatprep.subr.bf16.mxu0 0
  %123 = vmatpush1.bf16.msra.mxu0 0
  %124 = vmatprep.subr.bf16.mxu0 0
  %125 = vmatpush1.bf16.msra.mxu0 0
  %126 = vmatprep.subr.bf16.mxu0 0
  %127 = vmatpush1.bf16.msra.mxu0 0
  %128 = vmatprep.subr.bf16.mxu0 0
  %129 = vmatpush1.bf16.msra.mxu0 0
  %130 = vmatprep.subr.bf16.mxu0 0
  %131 = vmatpush1.bf16.msra.mxu0 0
  %132 = vmatprep.mubr.bf16.mxu0 0
  %133 = vmatmul.mubr.bf16.gmra.mrb[0].mxu0 %v98
  %v134 = vpop.f32.mrb[0].mxu0
  %v135 = vadd.f32 %v84, %v134
  %v136 = vpop.f32.mrb[0].mxu0
  %v137 = vpop.f32.mrb[0].mxu0
  %v138 = vadd.f32 %v84, %v137
  %v139 = vpop.f32.mrb[0].mxu0
  %140 = vdwg.mxu0
  %v141 = vpack.c.bf16 %v138, %v135
  %v143 = vunpack.c.l.b16 %v141
  %v144 = vunpack.c.h.b16 %v141
  %v145 = vpack.c.b16 %v143, %v143
  %v146 = vpack.c.b16 %v144, %v144
  %v149 = vunpack.c.l.s4 1966171168
  %v150 = vunpack.c.0.s8 %v149
  %v151 = vlaneseq
  %v152 = vshrl.u32 %v151, 7
  %v153 = vsub.s32 %v150, %v152
  %v154 = vrot.slane %v30, %v153
  %v155 = vcombine.high %v154, %v154
  %v157 = vunpack.c.l.s4 1966171168
  %v158 = vunpack.c.0.s8 %v157
  %v159 = vlaneseq
  %v160 = vshrl.u32 %v159, 7
  %v161 = vsub.s32 %v158, %v160
  %v162 = vrot.slane %v154, %v161
  %v164 = vunpack.c.l.s4 1966171168
  %v165 = vunpack.c.0.s8 %v164
  %v166 = vlaneseq
  %v167 = vshrl.u32 %v166, 7
  %v168 = vsub.s32 %v165, %v167
  %v169 = vrot.slane %v155, %v168
  %v170 = vlaneseq
  %v171 = vshrl.u32 %v170, 7
  %v172 = vsub.s32 0, %v171
  %v173 = vrot.slane %v162, %v172
  %v174 = vlaneseq
  %v175 = vshrl.u32 %v174, 7
  %v176 = vsub.s32 0, %v175
  %v177 = vrot.slane %v169, %v176
  %180 = vrot.lane.b32.xlu0 %v145, 96
  %v181 = vpop.permute.xlu0 %180
  %vm182 = vcmask 130048
  %v184 = vsel %vm182, %v145, 0
  %v187 = vsel %vm182, %v181, 0
  %189 = vmatprep.subr.bf16.mxu0 0
  %190 = vmatpush1.bf16.xpose.msra.mxu0 %v187
  %191 = vmatprep.subr.bf16.mxu0 0
  %192 = vmatpush1.bf16.xpose.msra.mxu0 0
  %193 = vmatprep.subr.bf16.mxu0 0
  %194 = vmatpush1.bf16.xpose.msra.mxu0 0
  %195 = vmatprep.subr.bf16.mxu0 0
  %196 = vmatpush1.bf16.xpose.msra.mxu0 0
  %197 = vmatprep.subr.bf16.mxu0 0
  %198 = vmatpush1.bf16.xpose.msra.mxu0 0
  %199 = vmatprep.subr.bf16.mxu0 0
  %200 = vmatpush1.bf16.xpose.msra.mxu0 0
  %201 = vmatprep.subr.bf16.mxu0 0
  %202 = vmatpush1.bf16.xpose.msra.mxu0 0
  %203 = vmatprep.subr.bf16.mxu0 0
  %204 = vmatpush1.bf16.xpose.msra.mxu0 0
  %205 = vmatprep.subr.bf16.mxu0 0
  %206 = vmatpush1.bf16.xpose.msra.mxu0 0
  %207 = vmatprep.subr.bf16.mxu0 0
  %208 = vmatpush1.bf16.xpose.msra.mxu0 0
  %209 = vmatprep.subr.bf16.mxu0 0
  %210 = vmatpush1.bf16.xpose.msra.mxu0 0
  %211 = vmatprep.subr.bf16.mxu0 0
  %212 = vmatpush1.bf16.xpose.msra.mxu0 0
  %213 = vmatprep.subr.bf16.mxu0 0
  %214 = vmatpush1.bf16.xpose.msra.mxu0 0
  %215 = vmatprep.subr.bf16.mxu0 0
  %216 = vmatpush1.bf16.xpose.msra.mxu0 0
  %217 = vmatprep.subr.bf16.mxu0 0
  %218 = vmatpush1.bf16.xpose.msra.mxu0 0
  %219 = vmatprep.subr.bf16.mxu0 0
  %220 = vmatpush1.bf16.xpose.msra.mxu0 0
  %221 = vmatprep.mubr.bf16.mxu0 0
  %222 = vmatmul.mubr.bf16.gmra.mrb[0].mxu0 %v184
  %v223 = vpop.f32.mrb[0].mxu0
  %v224 = vadd.f32 %v173, %v223
  %v225 = vpop.f32.mrb[0].mxu0
  %v226 = vpop.f32.mrb[0].mxu0
  %v227 = vpop.f32.mrb[0].mxu0
  %228 = vdwg.mxu0
  %229 = vrot.lane.b32.xlu0 %v146, 96
  %v230 = vpop.permute.xlu0 %229
  %v232 = vsel %vm182, %v146, 0
  %v235 = vsel %vm182, %v230, 0
  %237 = vmatprep.subr.bf16.mxu0 0
  %238 = vmatpush1.bf16.xpose.msra.mxu0 %v235
  %239 = vmatprep.subr.bf16.mxu0 0
  %240 = vmatpush1.bf16.xpose.msra.mxu0 0
  %241 = vmatprep.subr.bf16.mxu0 0
  %242 = vmatpush1.bf16.xpose.msra.mxu0 0
  %243 = vmatprep.subr.bf16.mxu0 0
  %244 = vmatpush1.bf16.xpose.msra.mxu0 0
  %245 = vmatprep.subr.bf16.mxu0 0
  %246 = vmatpush1.bf16.xpose.msra.mxu0 0
  %247 = vmatprep.subr.bf16.mxu0 0
  %248 = vmatpush1.bf16.xpose.msra.mxu0 0
  %249 = vmatprep.subr.bf16.mxu0 0
  %250 = vmatpush1.bf16.xpose.msra.mxu0 0
  %251 = vmatprep.subr.bf16.mxu0 0
  %252 = vmatpush1.bf16.xpose.msra.mxu0 0
  %253 = vmatprep.subr.bf16.mxu0 0
  %254 = vmatpush1.bf16.xpose.msra.mxu0 0
  %255 = vmatprep.subr.bf16.mxu0 0
  %256 = vmatpush1.bf16.xpose.msra.mxu0 0
  %257 = vmatprep.subr.bf16.mxu0 0
  %258 = vmatpush1.bf16.xpose.msra.mxu0 0
  %259 = vmatprep.subr.bf16.mxu0 0
  %260 = vmatpush1.bf16.xpose.msra.mxu0 0
  %261 = vmatprep.subr.bf16.mxu0 0
  %262 = vmatpush1.bf16.xpose.msra.mxu0 0
  %263 = vmatprep.subr.bf16.mxu0 0
  %264 = vmatpush1.bf16.xpose.msra.mxu0 0
  %265 = vmatprep.subr.bf16.mxu0 0
  %266 = vmatpush1.bf16.xpose.msra.mxu0 0
  %267 = vmatprep.subr.bf16.mxu0 0
  %268 = vmatpush1.bf16.xpose.msra.mxu0 0
  %269 = vmatprep.mubr.bf16.mxu0 0
  %270 = vmatmul.mubr.bf16.gmra.mrb[0].mxu0 %v232
  %v271 = vpop.f32.mrb[0].mxu0
  %v272 = vadd.f32 %v177, %v271
  %v273 = vpop.f32.mrb[0].mxu0
  %v274 = vpop.f32.mrb[0].mxu0
  %v275 = vpop.f32.mrb[0].mxu0
  %276 = vdwg.mxu0
  %vm277 = vcmask 64512
  %v278 = vsel %vm277, %v224, -inf
  %279 = vmax.xlane.f32.xlu0 %v278
  %v280 = vpop.xlane.xlu0 %279
  %v281 = vsel %vm277, %v272, -inf
  %282 = vmax.xlane.f32.xlu0 %v281
  %v283 = vpop.xlane.xlu0 %282
  %v284 = vsub.f32 %v224, %v280
  %v285 = vsub.f32 %v272, %v283
  %v286 = vmul.f32 %v284, 1.442695
  %v287 = vpow.pop %v286
  %v288 = vmul.f32 %v285, 1.442695
  %v289 = vpow.pop %v288
  %v290 = vsel %vm277, %v287, 0.0
  %291 = vadd.xlane.f32.xlu0 %v290
  %v292 = vpop.xlane.xlu0 %291
  %v293 = vsel %vm277, %v289, 0.0
  %294 = vadd.xlane.f32.xlu0 %v293
  %v295 = vpop.xlane.xlu0 %294
  %v296 = vrcp.pop %v292
  %v297 = vrcp.pop %v295
  %v298 = vmul.f32 %v287, %v296
  %v299 = vmul.f32 %v289, %v297
  %v300 = vpack.c.bf16 %v298, %v298
  %v301 = vpack.c.bf16 %v299, %v299
  %302 = vrot.lane.b32.xlu0 %v145, 64
  %v303 = vpop.permute.xlu0 %302
  %v305 = vsel %vm277, %v300, 0
  %vm307 = vcmask 1043456
  %v309 = vsel %vm307, %v303, 0
  %311 = vmatprep.subr.bf16.mxu0 0
  %312 = vmatpush1.bf16.msra.mxu0 %v309
  %313 = vmatprep.subr.bf16.mxu0 0
  %314 = vmatpush1.bf16.msra.mxu0 0
  %315 = vmatprep.subr.bf16.mxu0 0
  %316 = vmatpush1.bf16.msra.mxu0 0
  %317 = vmatprep.subr.bf16.mxu0 0
  %318 = vmatpush1.bf16.msra.mxu0 0
  %319 = vmatprep.subr.bf16.mxu0 0
  %320 = vmatpush1.bf16.msra.mxu0 0
  %321 = vmatprep.subr.bf16.mxu0 0
  %322 = vmatpush1.bf16.msra.mxu0 0
  %323 = vmatprep.subr.bf16.mxu0 0
  %324 = vmatpush1.bf16.msra.mxu0 0
  %325 = vmatprep.subr.bf16.mxu0 0
  %326 = vmatpush1.bf16.msra.mxu0 0
  %327 = vmatprep.subr.bf16.mxu0 0
  %328 = vmatpush1.bf16.msra.mxu0 0
  %329 = vmatprep.subr.bf16.mxu0 0
  %330 = vmatpush1.bf16.msra.mxu0 0
  %331 = vmatprep.subr.bf16.mxu0 0
  %332 = vmatpush1.bf16.msra.mxu0 0
  %333 = vmatprep.subr.bf16.mxu0 0
  %334 = vmatpush1.bf16.msra.mxu0 0
  %335 = vmatprep.subr.bf16.mxu0 0
  %336 = vmatpush1.bf16.msra.mxu0 0
  %337 = vmatprep.subr.bf16.mxu0 0
  %338 = vmatpush1.bf16.msra.mxu0 0
  %339 = vmatprep.subr.bf16.mxu0 0
  %340 = vmatpush1.bf16.msra.mxu0 0
  %341 = vmatprep.subr.bf16.mxu0 0
  %342 = vmatpush1.bf16.msra.mxu0 0
  %343 = vmatprep.mubr.bf16.mxu0 0
  %344 = vmatmul.mubr.bf16.gmra.mrb[0].mxu0 %v305
  %v345 = vpop.f32.mrb[0].mxu0
  %v346 = vadd.f32 0.0, %v345
  %v347 = vpop.f32.mrb[0].mxu0
  %v348 = vpop.f32.mrb[0].mxu0
  %v349 = vpop.f32.mrb[0].mxu0
  %350 = vdwg.mxu0
  %351 = vrot.lane.b32.xlu0 %v146, 64
  %v352 = vpop.permute.xlu0 %351
  %v354 = vsel %vm277, %v301, 0
  %v357 = vsel %vm307, %v352, 0
  %359 = vmatprep.subr.bf16.mxu0 0
  %360 = vmatpush1.bf16.msra.mxu0 %v357
  %361 = vmatprep.subr.bf16.mxu0 0
  %362 = vmatpush1.bf16.msra.mxu0 0
  %363 = vmatprep.subr.bf16.mxu0 0
  %364 = vmatpush1.bf16.msra.mxu0 0
  %365 = vmatprep.subr.bf16.mxu0 0
  %366 = vmatpush1.bf16.msra.mxu0 0
  %367 = vmatprep.subr.bf16.mxu0 0
  %368 = vmatpush1.bf16.msra.mxu0 0
  %369 = vmatprep.subr.bf16.mxu0 0
  %370 = vmatpush1.bf16.msra.mxu0 0
  %371 = vmatprep.subr.bf16.mxu0 0
  %372 = vmatpush1.bf16.msra.mxu0 0
  %373 = vmatprep.subr.bf16.mxu0 0
  %374 = vmatpush1.bf16.msra.mxu0 0
  %375 = vmatprep.subr.bf16.mxu0 0
  %376 = vmatpush1.bf16.msra.mxu0 0
  %377 = vmatprep.subr.bf16.mxu0 0
  %378 = vmatpush1.bf16.msra.mxu0 0
  %379 = vmatprep.subr.bf16.mxu0 0
  %380 = vmatpush1.bf16.msra.mxu0 0
  %381 = vmatprep.subr.bf16.mxu0 0
  %382 = vmatpush1.bf16.msra.mxu0 0
  %383 = vmatprep.subr.bf16.mxu0 0
  %384 = vmatpush1.bf16.msra.mxu0 0
  %385 = vmatprep.subr.bf16.mxu0 0
  %386 = vmatpush1.bf16.msra.mxu0 0
  %387 = vmatprep.subr.bf16.mxu0 0
  %388 = vmatpush1.bf16.msra.mxu0 0
  %389 = vmatprep.subr.bf16.mxu0 0
  %390 = vmatpush1.bf16.msra.mxu0 0
  %391 = vmatprep.mubr.bf16.mxu0 0
  %392 = vmatmul.mubr.bf16.gmra.mrb[0].mxu0 %v354
  %v393 = vpop.f32.mrb[0].mxu0
  %v394 = vadd.f32 0.0, %v393
  %v395 = vpop.f32.mrb[0].mxu0
  %v396 = vpop.f32.mrb[0].mxu0
  %v397 = vpop.f32.mrb[0].mxu0
  %398 = vdwg.mxu0
  %399 = vrot.lane.b32.xlu0 %v145, 112
  %v400 = vpop.permute.xlu0 %399
  %401 = vrot.lane.b32.xlu0 %v145, 80
  %v402 = vpop.permute.xlu0 %401
  %v404 = vsel %vm182, %v400, 0
  %v407 = vsel %vm182, %v402, 0
  %409 = vmatprep.subr.bf16.mxu0 0
  %410 = vmatpush1.bf16.xpose.msra.mxu0 %v407
  %411 = vmatprep.subr.bf16.mxu0 0
  %412 = vmatpush1.bf16.xpose.msra.mxu0 0
  %413 = vmatprep.subr.bf16.mxu0 0
  %414 = vmatpush1.bf16.xpose.msra.mxu0 0
  %415 = vmatprep.subr.bf16.mxu0 0
  %416 = vmatpush1.bf16.xpose.msra.mxu0 0
  %417 = vmatprep.subr.bf16.mxu0 0
  %418 = vmatpush1.bf16.xpose.msra.mxu0 0
  %419 = vmatprep.subr.bf16.mxu0 0
  %420 = vmatpush1.bf16.xpose.msra.mxu0 0
  %421 = vmatprep.subr.bf16.mxu0 0
  %422 = vmatpush1.bf16.xpose.msra.mxu0 0
  %423 = vmatprep.subr.bf16.mxu0 0
  %424 = vmatpush1.bf16.xpose.msra.mxu0 0
  %425 = vmatprep.subr.bf16.mxu0 0
  %426 = vmatpush1.bf16.xpose.msra.mxu0 0
  %427 = vmatprep.subr.bf16.mxu0 0
  %428 = vmatpush1.bf16.xpose.msra.mxu0 0
  %429 = vmatprep.subr.bf16.mxu0 0
  %430 = vmatpush1.bf16.xpose.msra.mxu0 0
  %431 = vmatprep.subr.bf16.mxu0 0
  %432 = vmatpush1.bf16.xpose.msra.mxu0 0
  %433 = vmatprep.subr.bf16.mxu0 0
  %434 = vmatpush1.bf16.xpose.msra.mxu0 0
  %435 = vmatprep.subr.bf16.mxu0 0
  %436 = vmatpush1.bf16.xpose.msra.mxu0 0
  %437 = vmatprep.subr.bf16.mxu0 0
  %438 = vmatpush1.bf16.xpose.msra.mxu0 0
  %439 = vmatprep.subr.bf16.mxu0 0
  %440 = vmatpush1.bf16.xpose.msra.mxu0 0
  %441 = vmatprep.mubr.bf16.mxu0 0
  %442 = vmatmul.mubr.bf16.gmra.mrb[0].mxu0 %v404
  %v443 = vpop.f32.mrb[0].mxu0
  %v444 = vadd.f32 %v173, %v443
  %v445 = vpop.f32.mrb[0].mxu0
  %v446 = vpop.f32.mrb[0].mxu0
  %v447 = vpop.f32.mrb[0].mxu0
  %448 = vdwg.mxu0
  %449 = vrot.lane.b32.xlu0 %v146, 112
  %v450 = vpop.permute.xlu0 %449
  %451 = vrot.lane.b32.xlu0 %v146, 80
  %v452 = vpop.permute.xlu0 %451
  %v454 = vsel %vm182, %v450, 0
  %v457 = vsel %vm182, %v452, 0
  %459 = vmatprep.subr.bf16.mxu0 0
  %460 = vmatpush1.bf16.xpose.msra.mxu0 %v457
  %461 = vmatprep.subr.bf16.mxu0 0
  %462 = vmatpush1.bf16.xpose.msra.mxu0 0
  %463 = vmatprep.subr.bf16.mxu0 0
  %464 = vmatpush1.bf16.xpose.msra.mxu0 0
  %465 = vmatprep.subr.bf16.mxu0 0
  %466 = vmatpush1.bf16.xpose.msra.mxu0 0
  %467 = vmatprep.subr.bf16.mxu0 0
  %468 = vmatpush1.bf16.xpose.msra.mxu0 0
  %469 = vmatprep.subr.bf16.mxu0 0
  %470 = vmatpush1.bf16.xpose.msra.mxu0 0
  %471 = vmatprep.subr.bf16.mxu0 0
  %472 = vmatpush1.bf16.xpose.msra.mxu0 0
  %473 = vmatprep.subr.bf16.mxu0 0
  %474 = vmatpush1.bf16.xpose.msra.mxu0 0
  %475 = vmatprep.subr.bf16.mxu0 0
  %476 = vmatpush1.bf16.xpose.msra.mxu0 0
  %477 = vmatprep.subr.bf16.mxu0 0
  %478 = vmatpush1.bf16.xpose.msra.mxu0 0
  %479 = vmatprep.subr.bf16.mxu0 0
  %480 = vmatpush1.bf16.xpose.msra.mxu0 0
  %481 = vmatprep.subr.bf16.mxu0 0
  %482 = vmatpush1.bf16.xpose.msra.mxu0 0
  %483 = vmatprep.subr.bf16.mxu0 0
  %484 = vmatpush1.bf16.xpose.msra.mxu0 0
  %485 = vmatprep.subr.bf16.mxu0 0
  %486 = vmatpush1.bf16.xpose.msra.mxu0 0
  %487 = vmatprep.subr.bf16.mxu0 0
  %488 = vmatpush1.bf16.xpose.msra.mxu0 0
  %489 = vmatprep.subr.bf16.mxu0 0
  %490 = vmatpush1.bf16.xpose.msra.mxu0 0
  %491 = vmatprep.mubr.bf16.mxu0 0
  %492 = vmatmul.mubr.bf16.gmra.mrb[0].mxu0 %v454
  %v493 = vpop.f32.mrb[0].mxu0
  %v494 = vadd.f32 %v177, %v493
  %v495 = vpop.f32.mrb[0].mxu0
  %v496 = vpop.f32.mrb[0].mxu0
  %v497 = vpop.f32.mrb[0].mxu0
  %498 = vdwg.mxu0
  %v499 = vsel %vm277, %v444, -inf
  %500 = vmax.xlane.f32.xlu0 %v499
  %v501 = vpop.xlane.xlu0 %500
  %v502 = vsel %vm277, %v494, -inf
  %503 = vmax.xlane.f32.xlu0 %v502
  %v504 = vpop.xlane.xlu0 %503
  %v505 = vsub.f32 %v444, %v501
  %v506 = vsub.f32 %v494, %v504
  %v507 = vmul.f32 %v505, 1.442695
  %v508 = vpow.pop %v507
  %v509 = vmul.f32 %v506, 1.442695
  %v510 = vpow.pop %v509
  %v511 = vsel %vm277, %v508, 0.0
  %512 = vadd.xlane.f32.xlu0 %v511
  %v513 = vpop.xlane.xlu0 %512
  %v514 = vsel %vm277, %v510, 0.0
  %515 = vadd.xlane.f32.xlu0 %v514
  %v516 = vpop.xlane.xlu0 %515
  %v517 = vrcp.pop %v513
  %v518 = vrcp.pop %v516
  %v519 = vmul.f32 %v508, %v517
  %v520 = vmul.f32 %v510, %v518
  %v521 = vpack.c.bf16 %v519, %v519
  %v522 = vpack.c.bf16 %v520, %v520
  %523 = vrot.lane.b32.xlu0 %v145, 48
  %v524 = vpop.permute.xlu0 %523
  %v526 = vsel %vm277, %v521, 0
  %v529 = vsel %vm307, %v524, 0
  %531 = vmatprep.subr.bf16.mxu0 0
  %532 = vmatpush1.bf16.msra.mxu0 %v529
  %533 = vmatprep.subr.bf16.mxu0 0
  %534 = vmatpush1.bf16.msra.mxu0 0
  %535 = vmatprep.subr.bf16.mxu0 0
  %536 = vmatpush1.bf16.msra.mxu0 0
  %537 = vmatprep.subr.bf16.mxu0 0
  %538 = vmatpush1.bf16.msra.mxu0 0
  %539 = vmatprep.subr.bf16.mxu0 0
  %540 = vmatpush1.bf16.msra.mxu0 0
  %541 = vmatprep.subr.bf16.mxu0 0
  %542 = vmatpush1.bf16.msra.mxu0 0
  %543 = vmatprep.subr.bf16.mxu0 0
  %544 = vmatpush1.bf16.msra.mxu0 0
  %545 = vmatprep.subr.bf16.mxu0 0
  %546 = vmatpush1.bf16.msra.mxu0 0
  %547 = vmatprep.subr.bf16.mxu0 0
  %548 = vmatpush1.bf16.msra.mxu0 0
  %549 = vmatprep.subr.bf16.mxu0 0
  %550 = vmatpush1.bf16.msra.mxu0 0
  %551 = vmatprep.subr.bf16.mxu0 0
  %552 = vmatpush1.bf16.msra.mxu0 0
  %553 = vmatprep.subr.bf16.mxu0 0
  %554 = vmatpush1.bf16.msra.mxu0 0
  %555 = vmatprep.subr.bf16.mxu0 0
  %556 = vmatpush1.bf16.msra.mxu0 0
  %557 = vmatprep.subr.bf16.mxu0 0
  %558 = vmatpush1.bf16.msra.mxu0 0
  %559 = vmatprep.subr.bf16.mxu0 0
  %560 = vmatpush1.bf16.msra.mxu0 0
  %561 = vmatprep.subr.bf16.mxu0 0
  %562 = vmatpush1.bf16.msra.mxu0 0
  %563 = vmatprep.mubr.bf16.mxu0 0
  %564 = vmatmul.mubr.bf16.gmra.mrb[0].mxu0 %v526
  %v565 = vpop.f32.mrb[0].mxu0
  %v566 = vadd.f32 0.0, %v565
  %v567 = vpop.f32.mrb[0].mxu0
  %v568 = vpop.f32.mrb[0].mxu0
  %v569 = vpop.f32.mrb[0].mxu0
  %570 = vdwg.mxu0
  %571 = vrot.lane.b32.xlu0 %v146, 48
  %v572 = vpop.permute.xlu0 %571
  %v574 = vsel %vm277, %v522, 0
  %v577 = vsel %vm307, %v572, 0
  %579 = vmatprep.subr.bf16.mxu0 0
  %580 = vmatpush1.bf16.msra.mxu0 %v577
  %581 = vmatprep.subr.bf16.mxu0 0
  %582 = vmatpush1.bf16.msra.mxu0 0
  %583 = vmatprep.subr.bf16.mxu0 0
  %584 = vmatpush1.bf16.msra.mxu0 0
  %585 = vmatprep.subr.bf16.mxu0 0
  %586 = vmatpush1.bf16.msra.mxu0 0
  %587 = vmatprep.subr.bf16.mxu0 0
  %588 = vmatpush1.bf16.msra.mxu0 0
  %589 = vmatprep.subr.bf16.mxu0 0
  %590 = vmatpush1.bf16.msra.mxu0 0
  %591 = vmatprep.subr.bf16.mxu0 0
  %592 = vmatpush1.bf16.msra.mxu0 0
  %593 = vmatprep.subr.bf16.mxu0 0
  %594 = vmatpush1.bf16.msra.mxu0 0
  %595 = vmatprep.subr.bf16.mxu0 0
  %596 = vmatpush1.bf16.msra.mxu0 0
  %597 = vmatprep.subr.bf16.mxu0 0
  %598 = vmatpush1.bf16.msra.mxu0 0
  %599 = vmatprep.subr.bf16.mxu0 0
  %600 = vmatpush1.bf16.msra.mxu0 0
  %601 = vmatprep.subr.bf16.mxu0 0
  %602 = vmatpush1.bf16.msra.mxu0 0
  %603 = vmatprep.subr.bf16.mxu0 0
  %604 = vmatpush1.bf16.msra.mxu0 0
  %605 = vmatprep.subr.bf16.mxu0 0
  %606 = vmatpush1.bf16.msra.mxu0 0
  %607 = vmatprep.subr.bf16.mxu0 0
  %608 = vmatpush1.bf16.msra.mxu0 0
  %609 = vmatprep.subr.bf16.mxu0 0
  %610 = vmatpush1.bf16.msra.mxu0 0
  %611 = vmatprep.mubr.bf16.mxu0 0
  %612 = vmatmul.mubr.bf16.gmra.mrb[0].mxu0 %v574
  %v613 = vpop.f32.mrb[0].mxu0
  %v614 = vadd.f32 0.0, %v613
  %v615 = vpop.f32.mrb[0].mxu0
  %v616 = vpop.f32.mrb[0].mxu0
  %v617 = vpop.f32.mrb[0].mxu0
  %618 = vdwg.mxu0
  %621 = vrot.lane.b32.xlu0 %v566, 16
  %v622 = vpop.permute.xlu0 %621
  %623 = vrot.lane.b32.xlu0 %v614, 16
  %v624 = vpop.permute.xlu0 %623
  %v627 = vsel %vm182, %v346, %v622
  %v628 = vsel %vm182, %v394, %v624
  %v629 = vld [vmem:[%s4] sm:$0xf]
  %v630 = vld [vmem:[%s4 + $0x4] sm:$0xf]
  %v631 = vld [vmem:[%s4 + $0x8] sm:$0xf]
  %v632 = vld [vmem:[%s4 + $0xc] sm:$0xf]
  %v633 = vpack.c.bf16 %v628, %v627
  %v634 = vld [vmem:[%s2 + $0x5] sm:$0x1]
  %v635 = vlaneseq
  %v636 = vshrl.u32 %v635, 7
  %v637 = vsub.s32 0, %v636
  %v638 = vrot.slane %v634, %v637
  %v643 = vunpack.c.l.b16 %v629
  %v644 = vunpack.c.l.b16 %v630
  %v645 = vunpack.c.l.b16 %v631
  %v646 = vunpack.c.l.b16 %v632
  %v647 = vpack.c.b16 %v644, %v643
  %v648 = vpack.c.b16 %v646, %v645
  %v652 = vsel %vm35, %v633, 0
  %654 = vmatprep.subr.bf16.mxu0 0
  %655 = vmatpush1.bf16.msra.mxu0 %v647
  %656 = vmatprep.subr.bf16.mxu0 0
  %657 = vmatpush1.bf16.msra.mxu0 %v648
  %658 = vmatprep.subr.bf16.mxu0 0
  %659 = vmatpush1.bf16.msra.mxu0 0
  %660 = vmatprep.subr.bf16.mxu0 0
  %661 = vmatpush1.bf16.msra.mxu0 0
  %662 = vmatprep.subr.bf16.mxu0 0
  %663 = vmatpush1.bf16.msra.mxu0 0
  %664 = vmatprep.subr.bf16.mxu0 0
  %665 = vmatpush1.bf16.msra.mxu0 0
  %666 = vmatprep.subr.bf16.mxu0 0
  %667 = vmatpush1.bf16.msra.mxu0 0
  %668 = vmatprep.subr.bf16.mxu0 0
  %669 = vmatpush1.bf16.msra.mxu0 0
  %670 = vmatprep.subr.bf16.mxu0 0
  %671 = vmatpush1.bf16.msra.mxu0 0
  %672 = vmatprep.subr.bf16.mxu0 0
  %673 = vmatpush1.bf16.msra.mxu0 0
  %674 = vmatprep.subr.bf16.mxu0 0
  %675 = vmatpush1.bf16.msra.mxu0 0
  %676 = vmatprep.subr.bf16.mxu0 0
  %677 = vmatpush1.bf16.msra.mxu0 0
  %678 = vmatprep.subr.bf16.mxu0 0
  %679 = vmatpush1.bf16.msra.mxu0 0
  %680 = vmatprep.subr.bf16.mxu0 0
  %681 = vmatpush1.bf16.msra.mxu0 0
  %682 = vmatprep.subr.bf16.mxu0 0
  %683 = vmatpush1.bf16.msra.mxu0 0
  %684 = vmatprep.subr.bf16.mxu0 0
  %685 = vmatpush1.bf16.msra.mxu0 0
  %686 = vmatprep.mubr.bf16.mxu0 0
  %687 = vmatmul.mubr.bf16.gmra.mrb[0].mxu0 %v652
  %v688 = vpop.f32.mrb[0].mxu0
  %v689 = vadd.f32 %v638, %v688
  %v690 = vpop.f32.mrb[0].mxu0
  %v691 = vpop.f32.mrb[0].mxu0
  %v692 = vadd.f32 %v638, %v691
  %v693 = vpop.f32.mrb[0].mxu0
  %694 = vdwg.mxu0
  %v695 = vadd.f32 %v689, %v73
  %v696 = vadd.f32 %v692, %v74
  %v697 = vld [vmem:[%s2 + $0x8] sm:$0x1]
  %v698 = vld [vmem:[%s2 + $0x9] sm:$0x1]
  %v699 = vsel %vm35, %v695, 0.0
  %700 = vadd.xlane.f32.xlu0 %v699
  %v701 = vpop.xlane.xlu0 %700
  %v702 = vsel %vm35, %v696, 0.0
  %703 = vadd.xlane.f32.xlu0 %v702
  %v704 = vpop.xlane.xlu0 %703
  %v705 = vmul.f32 %v701, %v42
  %v706 = vmul.f32 %v704, %v42
  %v707 = vsub.f32 %v695, %v705
  %v708 = vsub.f32 %v696, %v706
  %v709 = vmul.f32 %v707, %v707
  %v710 = vmul.f32 %v708, %v708
  %v711 = vsel %vm35, %v709, 0.0
  %712 = vadd.xlane.f32.xlu0 %v711
  %v713 = vpop.xlane.xlu0 %712
  %v714 = vsel %vm35, %v710, 0.0
  %715 = vadd.xlane.f32.xlu0 %v714
  %v716 = vpop.xlane.xlu0 %715
  %v717 = vmul.f32 %v713, %v42
  %v718 = vmul.f32 %v716, %v42
  %v719 = vadd.f32 %v717, 1e-12
  %v720 = vadd.f32 %v718, 1e-12
  %v721 = vrsqrt.pop %v719
  %v722 = vrsqrt.pop %v720
  %v723 = vmul.f32 %v707, %v721
  %v724 = vmul.f32 %v708, %v722
  %v725 = vlaneseq
  %v726 = vshrl.u32 %v725, 7
  %v727 = vsub.s32 0, %v726
  %v728 = vrot.slane %v697, %v727
  %v729 = vmul.f32 %v723, %v728
  %v730 = vmul.f32 %v724, %v728
  %v731 = vlaneseq
  %v732 = vshrl.u32 %v731, 7
  %v733 = vsub.s32 0, %v732
  %v734 = vrot.slane %v698, %v733
  %v735 = vadd.f32 %v729, %v734
  %v736 = vadd.f32 %v730, %v734
  %v737 = vld [vmem:[%s5] sm:$0xf]
  %v738 = vld [vmem:[%s5 + $0x4] sm:$0xf]
  %v739 = vld [vmem:[%s5 + $0x8] sm:$0xf]
  %v740 = vld [vmem:[%s5 + $0xc] sm:$0xf]
  %v741 = vpack.c.bf16 %v736, %v735
  %v742 = vld [vmem:[%s2 + $0x6] sm:$0x1]
  %v743 = vlaneseq
  %v744 = vshrl.u32 %v743, 7
  %v745 = vsub.s32 0, %v744
  %v746 = vrot.slane %v742, %v745
  %v751 = vunpack.c.l.b16 %v737
  %v752 = vunpack.c.l.b16 %v738
  %v753 = vunpack.c.l.b16 %v739
  %v754 = vunpack.c.l.b16 %v740
  %v755 = vpack.c.b16 %v752, %v751
  %v756 = vpack.c.b16 %v754, %v753
  %v760 = vsel %vm35, %v741, 0
  %762 = vmatprep.subr.bf16.mxu0 0
  %763 = vmatpush1.bf16.msra.mxu0 %v755
  %764 = vmatprep.subr.bf16.mxu0 0
  %765 = vmatpush1.bf16.msra.mxu0 %v756
  %766 = vmatprep.subr.bf16.mxu0 0
  %767 = vmatpush1.bf16.msra.mxu0 0
  %768 = vmatprep.subr.bf16.mxu0 0
  %769 = vmatpush1.bf16.msra.mxu0 0
  %770 = vmatprep.subr.bf16.mxu0 0
  %771 = vmatpush1.bf16.msra.mxu0 0
  %772 = vmatprep.subr.bf16.mxu0 0
  %773 = vmatpush1.bf16.msra.mxu0 0
  %774 = vmatprep.subr.bf16.mxu0 0
  %775 = vmatpush1.bf16.msra.mxu0 0
  %776 = vmatprep.subr.bf16.mxu0 0
  %777 = vmatpush1.bf16.msra.mxu0 0
  %778 = vmatprep.subr.bf16.mxu0 0
  %779 = vmatpush1.bf16.msra.mxu0 0
  %780 = vmatprep.subr.bf16.mxu0 0
  %781 = vmatpush1.bf16.msra.mxu0 0
  %782 = vmatprep.subr.bf16.mxu0 0
  %783 = vmatpush1.bf16.msra.mxu0 0
  %784 = vmatprep.subr.bf16.mxu0 0
  %785 = vmatpush1.bf16.msra.mxu0 0
  %786 = vmatprep.subr.bf16.mxu0 0
  %787 = vmatpush1.bf16.msra.mxu0 0
  %788 = vmatprep.subr.bf16.mxu0 0
  %789 = vmatpush1.bf16.msra.mxu0 0
  %790 = vmatprep.subr.bf16.mxu0 0
  %791 = vmatpush1.bf16.msra.mxu0 0
  %792 = vmatprep.subr.bf16.mxu0 0
  %793 = vmatpush1.bf16.msra.mxu0 0
  %794 = vmatprep.mubr.bf16.mxu0 0
  %795 = vmatmul.mubr.bf16.gmra.mrb[0].mxu0 %v760
  %v796 = vpop.f32.mrb[0].mxu0
  %v797 = vadd.f32 %v746, %v796
  %v798 = vpop.f32.mrb[0].mxu0
  %v799 = vpop.f32.mrb[0].mxu0
  %v800 = vadd.f32 %v746, %v799
  %v801 = vpop.f32.mrb[0].mxu0
  %802 = vdwg.mxu0
  %v803 = vmul.f32 %v797, 0.5
  %v804 = vmul.f32 %v800, 0.5
  %v805 = vmul.f32 %v797, 0.044715
  %v806 = vmul.f32 %v800, 0.044715
  %v807 = vmul.f32 %v805, %v797
  %v808 = vmul.f32 %v806, %v800
  %v809 = vmul.f32 %v807, %v797
  %v810 = vmul.f32 %v808, %v800
  %v811 = vadd.f32 %v797, %v809
  %v812 = vadd.f32 %v800, %v810
  %v813 = vmul.f32 %v811, 0.7978846
  %v814 = vmul.f32 %v812, 0.7978846
  %v815 = vtanh.pop %v813
  %v816 = vtanh.pop %v814
  %v817 = vadd.f32 %v815, 1.0
  %v818 = vadd.f32 %v816, 1.0
  %v819 = vmul.f32 %v803, %v817
  %v820 = vmul.f32 %v804, %v818
  %v821 = vld [vmem:[%s6] sm:$0xf]
  %v822 = vld [vmem:[%s6 + $0x4] sm:$0xf]
  %v823 = vld [vmem:[%s6 + $0x8] sm:$0xf]
  %v824 = vld [vmem:[%s6 + $0xc] sm:$0xf]
  %v825 = vld [vmem:[%s6 + $0x10] sm:$0xf]
  %v826 = vld [vmem:[%s6 + $0x14] sm:$0xf]
  %v827 = vld [vmem:[%s6 + $0x18] sm:$0xf]
  %v828 = vld [vmem:[%s6 + $0x1c] sm:$0xf]
  %v829 = vpack.c.bf16 %v820, %v819
  %v830 = vld [vmem:[%s2 + $0x7] sm:$0x1]
  %v831 = vlaneseq
  %v832 = vshrl.u32 %v831, 7
  %v833 = vsub.s32 0, %v832
  %v834 = vrot.slane %v830, %v833
  %v843 = vunpack.c.l.b16 %v821
  %v844 = vunpack.c.l.b16 %v822
  %v845 = vunpack.c.l.b16 %v823
  %v846 = vunpack.c.l.b16 %v824
  %v847 = vunpack.c.l.b16 %v825
  %v848 = vunpack.c.l.b16 %v826
  %v849 = vunpack.c.l.b16 %v827
  %v850 = vunpack.c.l.b16 %v828
  %v851 = vpack.c.b16 %v844, %v843
  %v852 = vpack.c.b16 %v846, %v845
  %v853 = vpack.c.b16 %v848, %v847
  %v854 = vpack.c.b16 %v850, %v849
  %vm859 = vcmask 523264
  %v861 = vsel %vm859, %v829, 0
  %863 = vmatprep.subr.bf16.mxu0 0
  %864 = vmatpush1.bf16.msra.mxu0 %v851
  %865 = vmatprep.subr.bf16.mxu0 0
  %866 = vmatpush1.bf16.msra.mxu0 %v852
  %867 = vmatprep.subr.bf16.mxu0 0
  %868 = vmatpush1.bf16.msra.mxu0 %v853
  %869 = vmatprep.subr.bf16.mxu0 0
  %870 = vmatpush1.bf16.msra.mxu0 %v854
  %871 = vmatprep.subr.bf16.mxu0 0
  %872 = vmatpush1.bf16.msra.mxu0 0
  %873 = vmatprep.subr.bf16.mxu0 0
  %874 = vmatpush1.bf16.msra.mxu0 0
  %875 = vmatprep.subr.bf16.mxu0 0
  %876 = vmatpush1.bf16.msra.mxu0 0
  %877 = vmatprep.subr.bf16.mxu0 0
  %878 = vmatpush1.bf16.msra.mxu0 0
  %879 = vmatprep.subr.bf16.mxu0 0
  %880 = vmatpush1.bf16.msra.mxu0 0
  %881 = vmatprep.subr.bf16.mxu0 0
  %882 = vmatpush1.bf16.msra.mxu0 0
  %883 = vmatprep.subr.bf16.mxu0 0
  %884 = vmatpush1.bf16.msra.mxu0 0
  %885 = vmatprep.subr.bf16.mxu0 0
  %886 = vmatpush1.bf16.msra.mxu0 0
  %887 = vmatprep.subr.bf16.mxu0 0
  %888 = vmatpush1.bf16.msra.mxu0 0
  %889 = vmatprep.subr.bf16.mxu0 0
  %890 = vmatpush1.bf16.msra.mxu0 0
  %891 = vmatprep.subr.bf16.mxu0 0
  %892 = vmatpush1.bf16.msra.mxu0 0
  %893 = vmatprep.subr.bf16.mxu0 0
  %894 = vmatpush1.bf16.msra.mxu0 0
  %895 = vmatprep.mubr.bf16.mxu0 0
  %896 = vmatmul.mubr.bf16.gmra.mrb[0].mxu0 %v861
  %v897 = vpop.f32.mrb[0].mxu0
  %v898 = vadd.f32 %v834, %v897
  %v899 = vpop.f32.mrb[0].mxu0
  %v900 = vpop.f32.mrb[0].mxu0
  %v901 = vadd.f32 %v834, %v900
  %v902 = vpop.f32.mrb[0].mxu0
  %903 = vdwg.mxu0
  %v904 = vadd.f32 %v898, %v735
  %v905 = vadd.f32 %v901, %v736
  %v906 = vld [vmem:[%s2 + $0xa] sm:$0x1]
  %v907 = vld [vmem:[%s2 + $0xb] sm:$0x1]
  %v908 = vsel %vm35, %v904, 0.0
  %909 = vadd.xlane.f32.xlu0 %v908
  %v910 = vpop.xlane.xlu0 %909
  %v911 = vsel %vm35, %v905, 0.0
  %912 = vadd.xlane.f32.xlu0 %v911
  %v913 = vpop.xlane.xlu0 %912
  %v914 = vmul.f32 %v910, %v42
  %v915 = vmul.f32 %v913, %v42
  %v916 = vsub.f32 %v904, %v914
  %v917 = vsub.f32 %v905, %v915
  %v918 = vmul.f32 %v916, %v916
  %v919 = vmul.f32 %v917, %v917
  %v920 = vsel %vm35, %v918, 0.0
  %921 = vadd.xlane.f32.xlu0 %v920
  %v922 = vpop.xlane.xlu0 %921
  %v923 = vsel %vm35, %v919, 0.0
  %924 = vadd.xlane.f32.xlu0 %v923
  %v925 = vpop.xlane.xlu0 %924
  %v926 = vmul.f32 %v922, %v42
  %v927 = vmul.f32 %v925, %v42
  %v928 = vadd.f32 %v926, 1e-12
  %v929 = vadd.f32 %v927, 1e-12
  %v930 = vrsqrt.pop %v928
  %v931 = vrsqrt.pop %v929
  %v932 = vmul.f32 %v916, %v930
  %v933 = vmul.f32 %v917, %v931
  %v934 = vlaneseq
  %v935 = vshrl.u32 %v934, 7
  %v936 = vsub.s32 0, %v935
  %v937 = vrot.slane %v906, %v936
  %v938 = vmul.f32 %v932, %v937
  %v939 = vmul.f32 %v933, %v937
  %v940 = vlaneseq
  %v941 = vshrl.u32 %v940, 7
  %v942 = vsub.s32 0, %v941
  %v943 = vrot.slane %v907, %v942
  %v944 = vadd.f32 %v938, %v943
  %v945 = vadd.f32 %v939, %v943
  %s946 = scalar_lea.vmem %s3, 16
  %v947 = vld [vmem:[%s946] sm:$0xf]
  %v948 = vld [vmem:[%s946 + $0x4] sm:$0xf]
  %v949 = vld [vmem:[%s946 + $0x8] sm:$0xf]
  %v950 = vld [vmem:[%s946 + $0xc] sm:$0xf]
  %v951 = vpack.c.bf16 %v945, %v944
  %v952 = vld [vmem:[%s2 + $0xc] sm:$0x1]
  %v953 = vlaneseq
  %v954 = vshrl.u32 %v953, 7
  %v955 = vsub.s32 0, %v954
  %v956 = vrot.slane %v952, %v955
  %v961 = vunpack.c.l.b16 %v947
  %v962 = vunpack.c.l.b16 %v948
  %v963 = vunpack.c.l.b16 %v949
  %v964 = vunpack.c.l.b16 %v950
  %v965 = vpack.c.b16 %v962, %v961
  %v966 = vpack.c.b16 %v964, %v963
  %v970 = vsel %vm35, %v951, 0
  %972 = vmatprep.subr.bf16.mxu0 0
  %973 = vmatpush1.bf16.msra.mxu0 %v965
  %974 = vmatprep.subr.bf16.mxu0 0
  %975 = vmatpush1.bf16.msra.mxu0 %v966
  %976 = vmatprep.subr.bf16.mxu0 0
  %977 = vmatpush1.bf16.msra.mxu0 0
  %978 = vmatprep.subr.bf16.mxu0 0
  %979 = vmatpush1.bf16.msra.mxu0 0
  %980 = vmatprep.subr.bf16.mxu0 0
  %981 = vmatpush1.bf16.msra.mxu0 0
  %982 = vmatprep.subr.bf16.mxu0 0
  %983 = vmatpush1.bf16.msra.mxu0 0
  %984 = vmatprep.subr.bf16.mxu0 0
  %985 = vmatpush1.bf16.msra.mxu0 0
  %986 = vmatprep.subr.bf16.mxu0 0
  %987 = vmatpush1.bf16.msra.mxu0 0
  %988 = vmatprep.subr.bf16.mxu0 0
  %989 = vmatpush1.bf16.msra.mxu0 0
  %990 = vmatprep.subr.bf16.mxu0 0
  %991 = vmatpush1.bf16.msra.mxu0 0
  %992 = vmatprep.subr.bf16.mxu0 0
  %993 = vmatpush1.bf16.msra.mxu0 0
  %994 = vmatprep.subr.bf16.mxu0 0
  %995 = vmatpush1.bf16.msra.mxu0 0
  %996 = vmatprep.subr.bf16.mxu0 0
  %997 = vmatpush1.bf16.msra.mxu0 0
  %998 = vmatprep.subr.bf16.mxu0 0
  %999 = vmatpush1.bf16.msra.mxu0 0
  %1000 = vmatprep.subr.bf16.mxu0 0
  %1001 = vmatpush1.bf16.msra.mxu0 0
  %1002 = vmatprep.subr.bf16.mxu0 0
  %1003 = vmatpush1.bf16.msra.mxu0 0
  %1004 = vmatprep.mubr.bf16.mxu0 0
  %1005 = vmatmul.mubr.bf16.gmra.mrb[0].mxu0 %v970
  %v1006 = vpop.f32.mrb[0].mxu0
  %v1007 = vadd.f32 %v956, %v1006
  %v1008 = vpop.f32.mrb[0].mxu0
  %v1009 = vpop.f32.mrb[0].mxu0
  %v1010 = vadd.f32 %v956, %v1009
  %v1011 = vpop.f32.mrb[0].mxu0
  %1012 = vdwg.mxu0
  %v1013 = vpack.c.bf16 %v1010, %v1007
  %v1015 = vunpack.c.l.b16 %v1013
  %v1016 = vunpack.c.h.b16 %v1013
  %v1017 = vpack.c.b16 %v1015, %v1015
  %v1018 = vpack.c.b16 %v1016, %v1016
  %1019 = vrot.lane.b32.xlu0 %v1017, 96
  %v1020 = vpop.permute.xlu0 %1019
  %v1022 = vsel %vm182, %v1017, 0
  %v1025 = vsel %vm182, %v1020, 0
  %1027 = vmatprep.subr.bf16.mxu0 0
  %1028 = vmatpush1.bf16.xpose.msra.mxu0 %v1025
  %1029 = vmatprep.subr.bf16.mxu0 0
  %1030 = vmatpush1.bf16.xpose.msra.mxu0 0
  %1031 = vmatprep.subr.bf16.mxu0 0
  %1032 = vmatpush1.bf16.xpose.msra.mxu0 0
  %1033 = vmatprep.subr.bf16.mxu0 0
  %1034 = vmatpush1.bf16.xpose.msra.mxu0 0
  %1035 = vmatprep.subr.bf16.mxu0 0
  %1036 = vmatpush1.bf16.xpose.msra.mxu0 0
  %1037 = vmatprep.subr.bf16.mxu0 0
  %1038 = vmatpush1.bf16.xpose.msra.mxu0 0
  %1039 = vmatprep.subr.bf16.mxu0 0
  %1040 = vmatpush1.bf16.xpose.msra.mxu0 0
  %1041 = vmatprep.subr.bf16.mxu0 0
  %1042 = vmatpush1.bf16.xpose.msra.mxu0 0
  %1043 = vmatprep.subr.bf16.mxu0 0
  %1044 = vmatpush1.bf16.xpose.msra.mxu0 0
  %1045 = vmatprep.subr.bf16.mxu0 0
  %1046 = vmatpush1.bf16.xpose.msra.mxu0 0
  %1047 = vmatprep.subr.bf16.mxu0 0
  %1048 = vmatpush1.bf16.xpose.msra.mxu0 0
  %1049 = vmatprep.subr.bf16.mxu0 0
  %1050 = vmatpush1.bf16.xpose.msra.mxu0 0
  %1051 = vmatprep.subr.bf16.mxu0 0
  %1052 = vmatpush1.bf16.xpose.msra.mxu0 0
  %1053 = vmatprep.subr.bf16.mxu0 0
  %1054 = vmatpush1.bf16.xpose.msra.mxu0 0
  %1055 = vmatprep.subr.bf16.mxu0 0
  %1056 = vmatpush1.bf16.xpose.msra.mxu0 0
  %1057 = vmatprep.subr.bf16.mxu0 0
  %1058 = vmatpush1.bf16.xpose.msra.mxu0 0
  %1059 = vmatprep.mubr.bf16.mxu0 0
  %1060 = vmatmul.mubr.bf16.gmra.mrb[0].mxu0 %v1022
  %v1061 = vpop.f32.mrb[0].mxu0
  %v1062 = vadd.f32 %v173, %v1061
  %v1063 = vpop.f32.mrb[0].mxu0
  %v1064 = vpop.f32.mrb[0].mxu0
  %v1065 = vpop.f32.mrb[0].mxu0
  %1066 = vdwg.mxu0
  %1067 = vrot.lane.b32.xlu0 %v1018, 96
  %v1068 = vpop.permute.xlu0 %1067
  %v1070 = vsel %vm182, %v1018, 0
  %v1073 = vsel %vm182, %v1068, 0
  %1075 = vmatprep.subr.bf16.mxu0 0
  %1076 = vmatpush1.bf16.xpose.msra.mxu0 %v1073
  %1077 = vmatprep.subr.bf16.mxu0 0
  %1078 = vmatpush1.bf16.xpose.msra.mxu0 0
  %1079 = vmatprep.subr.bf16.mxu0 0
  %1080 = vmatpush1.bf16.xpose.msra.mxu0 0
  %1081 = vmatprep.subr.bf16.mxu0 0
  %1082 = vmatpush1.bf16.xpose.msra.mxu0 0
  %1083 = vmatprep.subr.bf16.mxu0 0
  %1084 = vmatpush1.bf16.xpose.msra.mxu0 0
  %1085 = vmatprep.subr.bf16.mxu0 0
  %1086 = vmatpush1.bf16.xpose.msra.mxu0 0
  %1087 = vmatprep.subr.bf16.mxu0 0
  %1088 = vmatpush1.bf16.xpose.msra.mxu0 0
  %1089 = vmatprep.subr.bf16.mxu0 0
  %1090 = vmatpush1.bf16.xpose.msra.mxu0 0
  %1091 = vmatprep.subr.bf16.mxu0 0
  %1092 = vmatpush1.bf16.xpose.msra.mxu0 0
  %1093 = vmatprep.subr.bf16.mxu0 0
  %1094 = vmatpush1.bf16.xpose.msra.mxu0 0
  %1095 = vmatprep.subr.bf16.mxu0 0
  %1096 = vmatpush1.bf16.xpose.msra.mxu0 0
  %1097 = vmatprep.subr.bf16.mxu0 0
  %1098 = vmatpush1.bf16.xpose.msra.mxu0 0
  %1099 = vmatprep.subr.bf16.mxu0 0
  %1100 = vmatpush1.bf16.xpose.msra.mxu0 0
  %1101 = vmatprep.subr.bf16.mxu0 0
  %1102 = vmatpush1.bf16.xpose.msra.mxu0 0
  %1103 = vmatprep.subr.bf16.mxu0 0
  %1104 = vmatpush1.bf16.xpose.msra.mxu0 0
  %1105 = vmatprep.subr.bf16.mxu0 0
  %1106 = vmatpush1.bf16.xpose.msra.mxu0 0
  %1107 = vmatprep.mubr.bf16.mxu0 0
  %1108 = vmatmul.mubr.bf16.gmra.mrb[0].mxu0 %v1070
  %v1109 = vpop.f32.mrb[0].mxu0
  %v1110 = vadd.f32 %v177, %v1109
  %v1111 = vpop.f32.mrb[0].mxu0
  %v1112 = vpop.f32.mrb[0].mxu0
  %v1113 = vpop.f32.mrb[0].mxu0
  %1114 = vdwg.mxu0
  %v1115 = vsel %vm277, %v1062, -inf
  %1116 = vmax.xlane.f32.xlu0 %v1115
  %v1117 = vpop.xlane.xlu0 %1116
  %v1118 = vsel %vm277, %v1110, -inf
  %1119 = vmax.xlane.f32.xlu0 %v1118
  %v1120 = vpop.xlane.xlu0 %1119
  %v1121 = vsub.f32 %v1062, %v1117
  %v1122 = vsub.f32 %v1110, %v1120
  %v1123 = vmul.f32 %v1121, 1.442695
  %v1124 = vpow.pop %v1123
  %v1125 = vmul.f32 %v1122, 1.442695
  %v1126 = vpow.pop %v1125
  %v1127 = vsel %vm277, %v1124, 0.0
  %1128 = vadd.xlane.f32.xlu0 %v1127
  %v1129 = vpop.xlane.xlu0 %1128
  %v1130 = vsel %vm277, %v1126, 0.0
  %1131 = vadd.xlane.f32.xlu0 %v1130
  %v1132 = vpop.xlane.xlu0 %1131
  %v1133 = vrcp.pop %v1129
  %v1134 = vrcp.pop %v1132
  %v1135 = vmul.f32 %v1124, %v1133
  %v1136 = vmul.f32 %v1126, %v1134
  %v1137 = vpack.c.bf16 %v1135, %v1135
  %v1138 = vpack.c.bf16 %v1136, %v1136
  %1139 = vrot.lane.b32.xlu0 %v1017, 64
  %v1140 = vpop.permute.xlu0 %1139
  %v1142 = vsel %vm277, %v1137, 0
  %v1145 = vsel %vm307, %v1140, 0
  %1147 = vmatprep.subr.bf16.mxu0 0
  %1148 = vmatpush1.bf16.msra.mxu0 %v1145
  %1149 = vmatprep.subr.bf16.mxu0 0
  %1150 = vmatpush1.bf16.msra.mxu0 0
  %1151 = vmatprep.subr.bf16.mxu0 0
  %1152 = vmatpush1.bf16.msra.mxu0 0
  %1153 = vmatprep.subr.bf16.mxu0 0
  %1154 = vmatpush1.bf16.msra.mxu0 0
  %1155 = vmatprep.subr.bf16.mxu0 0
  %1156 = vmatpush1.bf16.msra.mxu0 0
  %1157 = vmatprep.subr.bf16.mxu0 0
  %1158 = vmatpush1.bf16.msra.mxu0 0
  %1159 = vmatprep.subr.bf16.mxu0 0
  %1160 = vmatpush1.bf16.msra.mxu0 0
  %1161 = vmatprep.subr.bf16.mxu0 0
  %1162 = vmatpush1.bf16.msra.mxu0 0
  %1163 = vmatprep.subr.bf16.mxu0 0
  %1164 = vmatpush1.bf16.msra.mxu0 0
  %1165 = vmatprep.subr.bf16.mxu0 0
  %1166 = vmatpush1.bf16.msra.mxu0 0
  %1167 = vmatprep.subr.bf16.mxu0 0
  %1168 = vmatpush1.bf16.msra.mxu0 0
  %1169 = vmatprep.subr.bf16.mxu0 0
  %1170 = vmatpush1.bf16.msra.mxu0 0
  %1171 = vmatprep.subr.bf16.mxu0 0
  %1172 = vmatpush1.bf16.msra.mxu0 0
  %1173 = vmatprep.subr.bf16.mxu0 0
  %1174 = vmatpush1.bf16.msra.mxu0 0
  %1175 = vmatprep.subr.bf16.mxu0 0
  %1176 = vmatpush1.bf16.msra.mxu0 0
  %1177 = vmatprep.subr.bf16.mxu0 0
  %1178 = vmatpush1.bf16.msra.mxu0 0
  %1179 = vmatprep.mubr.bf16.mxu0 0
  %1180 = vmatmul.mubr.bf16.gmra.mrb[0].mxu0 %v1142
  %v1181 = vpop.f32.mrb[0].mxu0
  %v1182 = vadd.f32 0.0, %v1181
  %v1183 = vpop.f32.mrb[0].mxu0
  %v1184 = vpop.f32.mrb[0].mxu0
  %v1185 = vpop.f32.mrb[0].mxu0
  %1186 = vdwg.mxu0
  %1187 = vrot.lane.b32.xlu0 %v1018, 64
  %v1188 = vpop.permute.xlu0 %1187
  %v1190 = vsel %vm277, %v1138, 0
  %v1193 = vsel %vm307, %v1188, 0
  %1195 = vmatprep.subr.bf16.mxu0 0
  %1196 = vmatpush1.bf16.msra.mxu0 %v1193
  %1197 = vmatprep.subr.bf16.mxu0 0
  %1198 = vmatpush1.bf16.msra.mxu0 0
  %1199 = vmatprep.subr.bf16.mxu0 0
  %1200 = vmatpush1.bf16.msra.mxu0 0
  %1201 = vmatprep.subr.bf16.mxu0 0
  %1202 = vmatpush1.bf16.msra.mxu0 0
  %1203 = vmatprep.subr.bf16.mxu0 0
  %1204 = vmatpush1.bf16.msra.mxu0 0
  %1205 = vmatprep.subr.bf16.mxu0 0
  %1206 = vmatpush1.bf16.msra.mxu0 0
  %1207 = vmatprep.subr.bf16.mxu0 0
  %1208 = vmatpush1.bf16.msra.mxu0 0
  %1209 = vmatprep.subr.bf16.mxu0 0
  %1210 = vmatpush1.bf16.msra.mxu0 0
  %1211 = vmatprep.subr.bf16.mxu0 0
  %1212 = vmatpush1.bf16.msra.mxu0 0
  %1213 = vmatprep.subr.bf16.mxu0 0
  %1214 = vmatpush1.bf16.msra.mxu0 0
  %1215 = vmatprep.subr.bf16.mxu0 0
  %1216 = vmatpush1.bf16.msra.mxu0 0
  %1217 = vmatprep.subr.bf16.mxu0 0
  %1218 = vmatpush1.bf16.msra.mxu0 0
  %1219 = vmatprep.subr.bf16.mxu0 0
  %1220 = vmatpush1.bf16.msra.mxu0 0
  %1221 = vmatprep.subr.bf16.mxu0 0
  %1222 = vmatpush1.bf16.msra.mxu0 0
  %1223 = vmatprep.subr.bf16.mxu0 0
  %1224 = vmatpush1.bf16.msra.mxu0 0
  %1225 = vmatprep.subr.bf16.mxu0 0
  %1226 = vmatpush1.bf16.msra.mxu0 0
  %1227 = vmatprep.mubr.bf16.mxu0 0
  %1228 = vmatmul.mubr.bf16.gmra.mrb[0].mxu0 %v1190
  %v1229 = vpop.f32.mrb[0].mxu0
  %v1230 = vadd.f32 0.0, %v1229
  %v1231 = vpop.f32.mrb[0].mxu0
  %v1232 = vpop.f32.mrb[0].mxu0
  %v1233 = vpop.f32.mrb[0].mxu0
  %1234 = vdwg.mxu0
  %1235 = vrot.lane.b32.xlu0 %v1017, 112
  %v1236 = vpop.permute.xlu0 %1235
  %1237 = vrot.lane.b32.xlu0 %v1017, 80
  %v1238 = vpop.permute.xlu0 %1237
  %v1240 = vsel %vm182, %v1236, 0
  %v1243 = vsel %vm182, %v1238, 0
  %1245 = vmatprep.subr.bf16.mxu0 0
  %1246 = vmatpush1.bf16.xpose.msra.mxu0 %v1243
  %1247 = vmatprep.subr.bf16.mxu0 0
  %1248 = vmatpush1.bf16.xpose.msra.mxu0 0
  %1249 = vmatprep.subr.bf16.mxu0 0
  %1250 = vmatpush1.bf16.xpose.msra.mxu0 0
  %1251 = vmatprep.subr.bf16.mxu0 0
  %1252 = vmatpush1.bf16.xpose.msra.mxu0 0
  %1253 = vmatprep.subr.bf16.mxu0 0
  %1254 = vmatpush1.bf16.xpose.msra.mxu0 0
  %1255 = vmatprep.subr.bf16.mxu0 0
  %1256 = vmatpush1.bf16.xpose.msra.mxu0 0
  %1257 = vmatprep.subr.bf16.mxu0 0
  %1258 = vmatpush1.bf16.xpose.msra.mxu0 0
  %1259 = vmatprep.subr.bf16.mxu0 0
  %1260 = vmatpush1.bf16.xpose.msra.mxu0 0
  %1261 = vmatprep.subr.bf16.mxu0 0
  %1262 = vmatpush1.bf16.xpose.msra.mxu0 0
  %1263 = vmatprep.subr.bf16.mxu0 0
  %1264 = vmatpush1.bf16.xpose.msra.mxu0 0
  %1265 = vmatprep.subr.bf16.mxu0 0
  %1266 = vmatpush1.bf16.xpose.msra.mxu0 0
  %1267 = vmatprep.subr.bf16.mxu0 0
  %1268 = vmatpush1.bf16.xpose.msra.mxu0 0
  %1269 = vmatprep.subr.bf16.mxu0 0
  %1270 = vmatpush1.bf16.xpose.msra.mxu0 0
  %1271 = vmatprep.subr.bf16.mxu0 0
  %1272 = vmatpush1.bf16.xpose.msra.mxu0 0
  %1273 = vmatprep.subr.bf16.mxu0 0
  %1274 = vmatpush1.bf16.xpose.msra.mxu0 0
  %1275 = vmatprep.subr.bf16.mxu0 0
  %1276 = vmatpush1.bf16.xpose.msra.mxu0 0
  %1277 = vmatprep.mubr.bf16.mxu0 0
  %1278 = vmatmul.mubr.bf16.gmra.mrb[0].mxu0 %v1240
  %v1279 = vpop.f32.mrb[0].mxu0
  %v1280 = vadd.f32 %v173, %v1279
  %v1281 = vpop.f32.mrb[0].mxu0
  %v1282 = vpop.f32.mrb[0].mxu0
  %v1283 = vpop.f32.mrb[0].mxu0
  %1284 = vdwg.mxu0
  %1285 = vrot.lane.b32.xlu0 %v1018, 112
  %v1286 = vpop.permute.xlu0 %1285
  %1287 = vrot.lane.b32.xlu0 %v1018, 80
  %v1288 = vpop.permute.xlu0 %1287
  %v1290 = vsel %vm182, %v1286, 0
  %v1293 = vsel %vm182, %v1288, 0
  %1295 = vmatprep.subr.bf16.mxu0 0
  %1296 = vmatpush1.bf16.xpose.msra.mxu0 %v1293
  %1297 = vmatprep.subr.bf16.mxu0 0
  %1298 = vmatpush1.bf16.xpose.msra.mxu0 0
  %1299 = vmatprep.subr.bf16.mxu0 0
  %1300 = vmatpush1.bf16.xpose.msra.mxu0 0
  %1301 = vmatprep.subr.bf16.mxu0 0
  %1302 = vmatpush1.bf16.xpose.msra.mxu0 0
  %1303 = vmatprep.subr.bf16.mxu0 0
  %1304 = vmatpush1.bf16.xpose.msra.mxu0 0
  %1305 = vmatprep.subr.bf16.mxu0 0
  %1306 = vmatpush1.bf16.xpose.msra.mxu0 0
  %1307 = vmatprep.subr.bf16.mxu0 0
  %1308 = vmatpush1.bf16.xpose.msra.mxu0 0
  %1309 = vmatprep.subr.bf16.mxu0 0
  %1310 = vmatpush1.bf16.xpose.msra.mxu0 0
  %1311 = vmatprep.subr.bf16.mxu0 0
  %1312 = vmatpush1.bf16.xpose.msra.mxu0 0
  %1313 = vmatprep.subr.bf16.mxu0 0
  %1314 = vmatpush1.bf16.xpose.msra.mxu0 0
  %1315 = vmatprep.subr.bf16.mxu0 0
  %1316 = vmatpush1.bf16.xpose.msra.mxu0 0
  %1317 = vmatprep.subr.bf16.mxu0 0
  %1318 = vmatpush1.bf16.xpose.msra.mxu0 0
  %1319 = vmatprep.subr.bf16.mxu0 0
  %1320 = vmatpush1.bf16.xpose.msra.mxu0 0
  %1321 = vmatprep.subr.bf16.mxu0 0
  %1322 = vmatpush1.bf16.xpose.msra.mxu0 0
  %1323 = vmatprep.subr.bf16.mxu0 0
  %1324 = vmatpush1.bf16.xpose.msra.mxu0 0
  %1325 = vmatprep.subr.bf16.mxu0 0
  %1326 = vmatpush1.bf16.xpose.msra.mxu0 0
  %1327 = vmatprep.mubr.bf16.mxu0 0
  %1328 = vmatmul.mubr.bf16.gmra.mrb[0].mxu0 %v1290
  %v1329 = vpop.f32.mrb[0].mxu0
  %v1330 = vadd.f32 %v177, %v1329
  %v1331 = vpop.f32.mrb[0].mxu0
  %v1332 = vpop.f32.mrb[0].mxu0
  %v1333 = vpop.f32.mrb[0].mxu0
  %1334 = vdwg.mxu0
  %v1335 = vsel %vm277, %v1280, -inf
  %1336 = vmax.xlane.f32.xlu0 %v1335
  %v1337 = vpop.xlane.xlu0 %1336
  %v1338 = vsel %vm277, %v1330, -inf
  %1339 = vmax.xlane.f32.xlu0 %v1338
  %v1340 = vpop.xlane.xlu0 %1339
  %v1341 = vsub.f32 %v1280, %v1337
  %v1342 = vsub.f32 %v1330, %v1340
  %v1343 = vmul.f32 %v1341, 1.442695
  %v1344 = vpow.pop %v1343
  %v1345 = vmul.f32 %v1342, 1.442695
  %v1346 = vpow.pop %v1345
  %v1347 = vsel %vm277, %v1344, 0.0
  %1348 = vadd.xlane.f32.xlu0 %v1347
  %v1349 = vpop.xlane.xlu0 %1348
  %v1350 = vsel %vm277, %v1346, 0.0
  %1351 = vadd.xlane.f32.xlu0 %v1350
  %v1352 = vpop.xlane.xlu0 %1351
  %v1353 = vrcp.pop %v1349
  %v1354 = vrcp.pop %v1352
  %v1355 = vmul.f32 %v1344, %v1353
  %v1356 = vmul.f32 %v1346, %v1354
  %v1357 = vpack.c.bf16 %v1355, %v1355
  %v1358 = vpack.c.bf16 %v1356, %v1356
  %1359 = vrot.lane.b32.xlu0 %v1017, 48
  %v1360 = vpop.permute.xlu0 %1359
  %v1362 = vsel %vm277, %v1357, 0
  %v1365 = vsel %vm307, %v1360, 0
  %1367 = vmatprep.subr.bf16.mxu0 0
  %1368 = vmatpush1.bf16.msra.mxu0 %v1365
  %1369 = vmatprep.subr.bf16.mxu0 0
  %1370 = vmatpush1.bf16.msra.mxu0 0
  %1371 = vmatprep.subr.bf16.mxu0 0
  %1372 = vmatpush1.bf16.msra.mxu0 0
  %1373 = vmatprep.subr.bf16.mxu0 0
  %1374 = vmatpush1.bf16.msra.mxu0 0
  %1375 = vmatprep.subr.bf16.mxu0 0
  %1376 = vmatpush1.bf16.msra.mxu0 0
  %1377 = vmatprep.subr.bf16.mxu0 0
  %1378 = vmatpush1.bf16.msra.mxu0 0
  %1379 = vmatprep.subr.bf16.mxu0 0
  %1380 = vmatpush1.bf16.msra.mxu0 0
  %1381 = vmatprep.subr.bf16.mxu0 0
  %1382 = vmatpush1.bf16.msra.mxu0 0
  %1383 = vmatprep.subr.bf16.mxu0 0
  %1384 = vmatpush1.bf16.msra.mxu0 0
  %1385 = vmatprep.subr.bf16.mxu0 0
  %1386 = vmatpush1.bf16.msra.mxu0 0
  %1387 = vmatprep.subr.bf16.mxu0 0
  %1388 = vmatpush1.bf16.msra.mxu0 0
  %1389 = vmatprep.subr.bf16.mxu0 0
  %1390 = vmatpush1.bf16.msra.mxu0 0
  %1391 = vmatprep.subr.bf16.mxu0 0
  %1392 = vmatpush1.bf16.msra.mxu0 0
  %1393 = vmatprep.subr.bf16.mxu0 0
  %1394 = vmatpush1.bf16.msra.mxu0 0
  %1395 = vmatprep.subr.bf16.mxu0 0
  %1396 = vmatpush1.bf16.msra.mxu0 0
  %1397 = vmatprep.subr.bf16.mxu0 0
  %1398 = vmatpush1.bf16.msra.mxu0 0
  %1399 = vmatprep.mubr.bf16.mxu0 0
  %1400 = vmatmul.mubr.bf16.gmra.mrb[0].mxu0 %v1362
  %v1401 = vpop.f32.mrb[0].mxu0
  %v1402 = vadd.f32 0.0, %v1401
  %v1403 = vpop.f32.mrb[0].mxu0
  %v1404 = vpop.f32.mrb[0].mxu0
  %v1405 = vpop.f32.mrb[0].mxu0
  %1406 = vdwg.mxu0
  %1407 = vrot.lane.b32.xlu0 %v1018, 48
  %v1408 = vpop.permute.xlu0 %1407
  %v1410 = vsel %vm277, %v1358, 0
  %v1413 = vsel %vm307, %v1408, 0
  %1415 = vmatprep.subr.bf16.mxu0 0
  %1416 = vmatpush1.bf16.msra.mxu0 %v1413
  %1417 = vmatprep.subr.bf16.mxu0 0
  %1418 = vmatpush1.bf16.msra.mxu0 0
  %1419 = vmatprep.subr.bf16.mxu0 0
  %1420 = vmatpush1.bf16.msra.mxu0 0
  %1421 = vmatprep.subr.bf16.mxu0 0
  %1422 = vmatpush1.bf16.msra.mxu0 0
  %1423 = vmatprep.subr.bf16.mxu0 0
  %1424 = vmatpush1.bf16.msra.mxu0 0
  %1425 = vmatprep.subr.bf16.mxu0 0
  %1426 = vmatpush1.bf16.msra.mxu0 0
  %1427 = vmatprep.subr.bf16.mxu0 0
  %1428 = vmatpush1.bf16.msra.mxu0 0
  %1429 = vmatprep.subr.bf16.mxu0 0
  %1430 = vmatpush1.bf16.msra.mxu0 0
  %1431 = vmatprep.subr.bf16.mxu0 0
  %1432 = vmatpush1.bf16.msra.mxu0 0
  %1433 = vmatprep.subr.bf16.mxu0 0
  %1434 = vmatpush1.bf16.msra.mxu0 0
  %1435 = vmatprep.subr.bf16.mxu0 0
  %1436 = vmatpush1.bf16.msra.mxu0 0
  %1437 = vmatprep.subr.bf16.mxu0 0
  %1438 = vmatpush1.bf16.msra.mxu0 0
  %1439 = vmatprep.subr.bf16.mxu0 0
  %1440 = vmatpush1.bf16.msra.mxu0 0
  %1441 = vmatprep.subr.bf16.mxu0 0
  %1442 = vmatpush1.bf16.msra.mxu0 0
  %1443 = vmatprep.subr.bf16.mxu0 0
  %1444 = vmatpush1.bf16.msra.mxu0 0
  %1445 = vmatprep.subr.bf16.mxu0 0
  %1446 = vmatpush1.bf16.msra.mxu0 0
  %1447 = vmatprep.mubr.bf16.mxu0 0
  %1448 = vmatmul.mubr.bf16.gmra.mrb[0].mxu0 %v1410
  %v1449 = vpop.f32.mrb[0].mxu0
  %v1450 = vadd.f32 0.0, %v1449
  %v1451 = vpop.f32.mrb[0].mxu0
  %v1452 = vpop.f32.mrb[0].mxu0
  %v1453 = vpop.f32.mrb[0].mxu0
  %1454 = vdwg.mxu0
  %1457 = vrot.lane.b32.xlu0 %v1402, 16
  %v1458 = vpop.permute.xlu0 %1457
  %1459 = vrot.lane.b32.xlu0 %v1450, 16
  %v1460 = vpop.permute.xlu0 %1459
  %v1463 = vsel %vm182, %v1182, %v1458
  %v1464 = vsel %vm182, %v1230, %v1460
  %s1465 = scalar_lea.vmem %s4, 16
  %v1466 = vld [vmem:[%s1465] sm:$0xf]
  %v1467 = vld [vmem:[%s1465 + $0x4] sm:$0xf]
  %v1468 = vld [vmem:[%s1465 + $0x8] sm:$0xf]
  %v1469 = vld [vmem:[%s1465 + $0xc] sm:$0xf]
  %v1470 = vpack.c.bf16 %v1464, %v1463
  %v1471 = vld [vmem:[%s2 + $0xd] sm:$0x1]
  %v1472 = vlaneseq
  %v1473 = vshrl.u32 %v1472, 7
  %v1474 = vsub.s32 0, %v1473
  %v1475 = vrot.slane %v1471, %v1474
  %v1480 = vunpack.c.l.b16 %v1466
  %v1481 = vunpack.c.l.b16 %v1467
  %v1482 = vunpack.c.l.b16 %v1468
  %v1483 = vunpack.c.l.b16 %v1469
  %v1484 = vpack.c.b16 %v1481, %v1480
  %v1485 = vpack.c.b16 %v1483, %v1482
  %v1489 = vsel %vm35, %v1470, 0
  %1491 = vmatprep.subr.bf16.mxu0 0
  %1492 = vmatpush1.bf16.msra.mxu0 %v1484
  %1493 = vmatprep.subr.bf16.mxu0 0
  %1494 = vmatpush1.bf16.msra.mxu0 %v1485
  %1495 = vmatprep.subr.bf16.mxu0 0
  %1496 = vmatpush1.bf16.msra.mxu0 0
  %1497 = vmatprep.subr.bf16.mxu0 0
  %1498 = vmatpush1.bf16.msra.mxu0 0
  %1499 = vmatprep.subr.bf16.mxu0 0
  %1500 = vmatpush1.bf16.msra.mxu0 0
  %1501 = vmatprep.subr.bf16.mxu0 0
  %1502 = vmatpush1.bf16.msra.mxu0 0
  %1503 = vmatprep.subr.bf16.mxu0 0
  %1504 = vmatpush1.bf16.msra.mxu0 0
  %1505 = vmatprep.subr.bf16.mxu0 0
  %1506 = vmatpush1.bf16.msra.mxu0 0
  %1507 = vmatprep.subr.bf16.mxu0 0
  %1508 = vmatpush1.bf16.msra.mxu0 0
  %1509 = vmatprep.subr.bf16.mxu0 0
  %1510 = vmatpush1.bf16.msra.mxu0 0
  %1511 = vmatprep.subr.bf16.mxu0 0
  %1512 = vmatpush1.bf16.msra.mxu0 0
  %1513 = vmatprep.subr.bf16.mxu0 0
  %1514 = vmatpush1.bf16.msra.mxu0 0
  %1515 = vmatprep.subr.bf16.mxu0 0
  %1516 = vmatpush1.bf16.msra.mxu0 0
  %1517 = vmatprep.subr.bf16.mxu0 0
  %1518 = vmatpush1.bf16.msra.mxu0 0
  %1519 = vmatprep.subr.bf16.mxu0 0
  %1520 = vmatpush1.bf16.msra.mxu0 0
  %1521 = vmatprep.subr.bf16.mxu0 0
  %1522 = vmatpush1.bf16.msra.mxu0 0
  %1523 = vmatprep.mubr.bf16.mxu0 0
  %1524 = vmatmul.mubr.bf16.gmra.mrb[0].mxu0 %v1489
  %v1525 = vpop.f32.mrb[0].mxu0
  %v1526 = vadd.f32 %v1475, %v1525
  %v1527 = vpop.f32.mrb[0].mxu0
  %v1528 = vpop.f32.mrb[0].mxu0
  %v1529 = vadd.f32 %v1475, %v1528
  %v1530 = vpop.f32.mrb[0].mxu0
  %1531 = vdwg.mxu0
  %v1532 = vadd.f32 %v1526, %v944
  %v1533 = vadd.f32 %v1529, %v945
  %v1534 = vld [vmem:[%s2 + $0x10] sm:$0x1]
  %v1535 = vld [vmem:[%s2 + $0x11] sm:$0x1]
  %v1536 = vsel %vm35, %v1532, 0.0
  %1537 = vadd.xlane.f32.xlu0 %v1536
  %v1538 = vpop.xlane.xlu0 %1537
  %v1539 = vsel %vm35, %v1533, 0.0
  %1540 = vadd.xlane.f32.xlu0 %v1539
  %v1541 = vpop.xlane.xlu0 %1540
  %v1542 = vmul.f32 %v1538, %v42
  %v1543 = vmul.f32 %v1541, %v42
  %v1544 = vsub.f32 %v1532, %v1542
  %v1545 = vsub.f32 %v1533, %v1543
  %v1546 = vmul.f32 %v1544, %v1544
  %v1547 = vmul.f32 %v1545, %v1545
  %v1548 = vsel %vm35, %v1546, 0.0
  %1549 = vadd.xlane.f32.xlu0 %v1548
  %v1550 = vpop.xlane.xlu0 %1549
  %v1551 = vsel %vm35, %v1547, 0.0
  %1552 = vadd.xlane.f32.xlu0 %v1551
  %v1553 = vpop.xlane.xlu0 %1552
  %v1554 = vmul.f32 %v1550, %v42
  %v1555 = vmul.f32 %v1553, %v42
  %v1556 = vadd.f32 %v1554, 1e-12
  %v1557 = vadd.f32 %v1555, 1e-12
  %v1558 = vrsqrt.pop %v1556
  %v1559 = vrsqrt.pop %v1557
  %v1560 = vmul.f32 %v1544, %v1558
  %v1561 = vmul.f32 %v1545, %v1559
  %v1562 = vlaneseq
  %v1563 = vshrl.u32 %v1562, 7
  %v1564 = vsub.s32 0, %v1563
  %v1565 = vrot.slane %v1534, %v1564
  %v1566 = vmul.f32 %v1560, %v1565
  %v1567 = vmul.f32 %v1561, %v1565
  %v1568 = vlaneseq
  %v1569 = vshrl.u32 %v1568, 7
  %v1570 = vsub.s32 0, %v1569
  %v1571 = vrot.slane %v1535, %v1570
  %v1572 = vadd.f32 %v1566, %v1571
  %v1573 = vadd.f32 %v1567, %v1571
  %s1574 = scalar_lea.vmem %s5, 16
  %v1575 = vld [vmem:[%s1574] sm:$0xf]
  %v1576 = vld [vmem:[%s1574 + $0x4] sm:$0xf]
  %v1577 = vld [vmem:[%s1574 + $0x8] sm:$0xf]
  %v1578 = vld [vmem:[%s1574 + $0xc] sm:$0xf]
  %v1579 = vpack.c.bf16 %v1573, %v1572
  %v1580 = vld [vmem:[%s2 + $0xe] sm:$0x1]
  %v1581 = vlaneseq
  %v1582 = vshrl.u32 %v1581, 7
  %v1583 = vsub.s32 0, %v1582
  %v1584 = vrot.slane %v1580, %v1583
  %v1589 = vunpack.c.l.b16 %v1575
  %v1590 = vunpack.c.l.b16 %v1576
  %v1591 = vunpack.c.l.b16 %v1577
  %v1592 = vunpack.c.l.b16 %v1578
  %v1593 = vpack.c.b16 %v1590, %v1589
  %v1594 = vpack.c.b16 %v1592, %v1591
  %v1598 = vsel %vm35, %v1579, 0
  %1600 = vmatprep.subr.bf16.mxu0 0
  %1601 = vmatpush1.bf16.msra.mxu0 %v1593
  %1602 = vmatprep.subr.bf16.mxu0 0
  %1603 = vmatpush1.bf16.msra.mxu0 %v1594
  %1604 = vmatprep.subr.bf16.mxu0 0
  %1605 = vmatpush1.bf16.msra.mxu0 0
  %1606 = vmatprep.subr.bf16.mxu0 0
  %1607 = vmatpush1.bf16.msra.mxu0 0
  %1608 = vmatprep.subr.bf16.mxu0 0
  %1609 = vmatpush1.bf16.msra.mxu0 0
  %1610 = vmatprep.subr.bf16.mxu0 0
  %1611 = vmatpush1.bf16.msra.mxu0 0
  %1612 = vmatprep.subr.bf16.mxu0 0
  %1613 = vmatpush1.bf16.msra.mxu0 0
  %1614 = vmatprep.subr.bf16.mxu0 0
  %1615 = vmatpush1.bf16.msra.mxu0 0
  %1616 = vmatprep.subr.bf16.mxu0 0
  %1617 = vmatpush1.bf16.msra.mxu0 0
  %1618 = vmatprep.subr.bf16.mxu0 0
  %1619 = vmatpush1.bf16.msra.mxu0 0
  %1620 = vmatprep.subr.bf16.mxu0 0
  %1621 = vmatpush1.bf16.msra.mxu0 0
  %1622 = vmatprep.subr.bf16.mxu0 0
  %1623 = vmatpush1.bf16.msra.mxu0 0
  %1624 = vmatprep.subr.bf16.mxu0 0
  %1625 = vmatpush1.bf16.msra.mxu0 0
  %1626 = vmatprep.subr.bf16.mxu0 0
  %1627 = vmatpush1.bf16.msra.mxu0 0
  %1628 = vmatprep.subr.bf16.mxu0 0
  %1629 = vmatpush1.bf16.msra.mxu0 0
  %1630 = vmatprep.subr.bf16.mxu0 0
  %1631 = vmatpush1.bf16.msra.mxu0 0
  %1632 = vmatprep.mubr.bf16.mxu0 0
  %1633 = vmatmul.mubr.bf16.gmra.mrb[0].mxu0 %v1598
  %v1634 = vpop.f32.mrb[0].mxu0
  %v1635 = vadd.f32 %v1584, %v1634
  %v1636 = vpop.f32.mrb[0].mxu0
  %v1637 = vpop.f32.mrb[0].mxu0
  %v1638 = vadd.f32 %v1584, %v1637
  %v1639 = vpop.f32.mrb[0].mxu0
  %1640 = vdwg.mxu0
  %v1641 = vmul.f32 %v1635, 0.5
  %v1642 = vmul.f32 %v1638, 0.5
  %v1643 = vmul.f32 %v1635, 0.044715
  %v1644 = vmul.f32 %v1638, 0.044715
  %v1645 = vmul.f32 %v1643, %v1635
  %v1646 = vmul.f32 %v1644, %v1638
  %v1647 = vmul.f32 %v1645, %v1635
  %v1648 = vmul.f32 %v1646, %v1638
  %v1649 = vadd.f32 %v1635, %v1647
  %v1650 = vadd.f32 %v1638, %v1648
  %v1651 = vmul.f32 %v1649, 0.7978846
  %v1652 = vmul.f32 %v1650, 0.7978846
  %v1653 = vtanh.pop %v1651
  %v1654 = vtanh.pop %v1652
  %v1655 = vadd.f32 %v1653, 1.0
  %v1656 = vadd.f32 %v1654, 1.0
  %v1657 = vmul.f32 %v1641, %v1655
  %v1658 = vmul.f32 %v1642, %v1656
  %s1659 = scalar_lea.vmem %s6, 32
  %v1660 = vld [vmem:[%s1659] sm:$0xf]
  %v1661 = vld [vmem:[%s1659 + $0x4] sm:$0xf]
  %v1662 = vld [vmem:[%s1659 + $0x8] sm:$0xf]
  %v1663 = vld [vmem:[%s1659 + $0xc] sm:$0xf]
  %v1664 = vld [vmem:[%s1659 + $0x10] sm:$0xf]
  %v1665 = vld [vmem:[%s1659 + $0x14] sm:$0xf]
  %v1666 = vld [vmem:[%s1659 + $0x18] sm:$0xf]
  %v1667 = vld [vmem:[%s1659 + $0x1c] sm:$0xf]
  %v1668 = vpack.c.bf16 %v1658, %v1657
  %v1669 = vld [vmem:[%s2 + $0xf] sm:$0x1]
  %v1670 = vlaneseq
  %v1671 = vshrl.u32 %v1670, 7
  %v1672 = vsub.s32 0, %v1671
  %v1673 = vrot.slane %v1669, %v1672
  %v1682 = vunpack.c.l.b16 %v1660
  %v1683 = vunpack.c.l.b16 %v1661
  %v1684 = vunpack.c.l.b16 %v1662
  %v1685 = vunpack.c.l.b16 %v1663
  %v1686 = vunpack.c.l.b16 %v1664
  %v1687 = vunpack.c.l.b16 %v1665
  %v1688 = vunpack.c.l.b16 %v1666
  %v1689 = vunpack.c.l.b16 %v1667
  %v1690 = vpack.c.b16 %v1683, %v1682
  %v1691 = vpack.c.b16 %v1685, %v1684
  %v1692 = vpack.c.b16 %v1687, %v1686
  %v1693 = vpack.c.b16 %v1689, %v1688
  %v1699 = vsel %vm859, %v1668, 0
  %1701 = vmatprep.subr.bf16.mxu0 0
  %1702 = vmatpush1.bf16.msra.mxu0 %v1690
  %1703 = vmatprep.subr.bf16.mxu0 0
  %1704 = vmatpush1.bf16.msra.mxu0 %v1691
  %1705 = vmatprep.subr.bf16.mxu0 0
  %1706 = vmatpush1.bf16.msra.mxu0 %v1692
  %1707 = vmatprep.subr.bf16.mxu0 0
  %1708 = vmatpush1.bf16.msra.mxu0 %v1693
  %1709 = vmatprep.subr.bf16.mxu0 0
  %1710 = vmatpush1.bf16.msra.mxu0 0
  %1711 = vmatprep.subr.bf16.mxu0 0
  %1712 = vmatpush1.bf16.msra.mxu0 0
  %1713 = vmatprep.subr.bf16.mxu0 0
  %1714 = vmatpush1.bf16.msra.mxu0 0
  %1715 = vmatprep.subr.bf16.mxu0 0
  %1716 = vmatpush1.bf16.msra.mxu0 0
  %1717 = vmatprep.subr.bf16.mxu0 0
  %1718 = vmatpush1.bf16.msra.mxu0 0
  %1719 = vmatprep.subr.bf16.mxu0 0
  %1720 = vmatpush1.bf16.msra.mxu0 0
  %1721 = vmatprep.subr.bf16.mxu0 0
  %1722 = vmatpush1.bf16.msra.mxu0 0
  %1723 = vmatprep.subr.bf16.mxu0 0
  %1724 = vmatpush1.bf16.msra.mxu0 0
  %1725 = vmatprep.subr.bf16.mxu0 0
  %1726 = vmatpush1.bf16.msra.mxu0 0
  %1727 = vmatprep.subr.bf16.mxu0 0
  %1728 = vmatpush1.bf16.msra.mxu0 0
  %1729 = vmatprep.subr.bf16.mxu0 0
  %1730 = vmatpush1.bf16.msra.mxu0 0
  %1731 = vmatprep.subr.bf16.mxu0 0
  %1732 = vmatpush1.bf16.msra.mxu0 0
  %1733 = vmatprep.mubr.bf16.mxu0 0
  %1734 = vmatmul.mubr.bf16.gmra.mrb[0].mxu0 %v1699
  %v1735 = vpop.f32.mrb[0].mxu0
  %v1736 = vadd.f32 %v1673, %v1735
  %v1737 = vpop.f32.mrb[0].mxu0
  %v1738 = vpop.f32.mrb[0].mxu0
  %v1739 = vadd.f32 %v1673, %v1738
  %v1740 = vpop.f32.mrb[0].mxu0
  %1741 = vdwg.mxu0
  %v1742 = vadd.f32 %v1736, %v1572
  %v1743 = vadd.f32 %v1739, %v1573
  %v1744 = vld [vmem:[%s2 + $0x12] sm:$0x1]
  %v1745 = vld [vmem:[%s2 + $0x13] sm:$0x1]
  %v1746 = vsel %vm35, %v1742, 0.0
  %1747 = vadd.xlane.f32.xlu0 %v1746
  %v1748 = vpop.xlane.xlu0 %1747
  %v1749 = vsel %vm35, %v1743, 0.0
  %1750 = vadd.xlane.f32.xlu0 %v1749
  %v1751 = vpop.xlane.xlu0 %1750
  %v1752 = vmul.f32 %v1748, %v42
  %v1753 = vmul.f32 %v1751, %v42
  %v1754 = vsub.f32 %v1742, %v1752
  %v1755 = vsub.f32 %v1743, %v1753
  %v1756 = vmul.f32 %v1754, %v1754
  %v1757 = vmul.f32 %v1755, %v1755
  %v1758 = vsel %vm35, %v1756, 0.0
  %1759 = vadd.xlane.f32.xlu0 %v1758
  %v1760 = vpop.xlane.xlu0 %1759
  %v1761 = vsel %vm35, %v1757, 0.0
  %1762 = vadd.xlane.f32.xlu0 %v1761
  %v1763 = vpop.xlane.xlu0 %1762
  %v1764 = vmul.f32 %v1760, %v42
  %v1765 = vmul.f32 %v1763, %v42
  %v1766 = vadd.f32 %v1764, 1e-12
  %v1767 = vadd.f32 %v1765, 1e-12
  %v1768 = vrsqrt.pop %v1766
  %v1769 = vrsqrt.pop %v1767
  %v1770 = vmul.f32 %v1754, %v1768
  %v1771 = vmul.f32 %v1755, %v1769
  %v1772 = vlaneseq
  %v1773 = vshrl.u32 %v1772, 7
  %v1774 = vsub.s32 0, %v1773
  %v1775 = vrot.slane %v1744, %v1774
  %v1776 = vmul.f32 %v1770, %v1775
  %v1777 = vmul.f32 %v1771, %v1775
  %v1778 = vlaneseq
  %v1779 = vshrl.u32 %v1778, 7
  %v1780 = vsub.s32 0, %v1779
  %v1781 = vrot.slane %v1745, %v1780
  %v1782 = vadd.f32 %v1776, %v1781
  %v1783 = vadd.f32 %v1777, %v1781
  %v1784 = vld [vmem:[%s7] sm:$0xf]
  %v1785 = vld [vmem:[%s7 + $0x4] sm:$0xf]
  %v1786 = vld [vmem:[%s7 + $0x8] sm:$0xf]
  %v1787 = vld [vmem:[%s7 + $0xc] sm:$0xf]
  %v1788 = vpack.c.bf16 %v1782, %v1782
  %v1789 = vpack.c.bf16 %v1783, %v1783
  %v1790 = vld [vmem:[%s2 + $0x2] sm:$0x1]
  %v1791 = vlaneseq
  %v1792 = vshrl.u32 %v1791, 7
  %v1793 = vsub.s32 0, %v1792
  %v1794 = vrot.slane %v1790, %v1793
  %v1797 = vunpack.c.l.b16 %v1788
  %v1798 = vunpack.c.l.b16 %v1789
  %v1799 = vrot.slane %v1798, 7
  %vm1800 = vcmask 1041409
  %v1801 = vsel %vm1800, %v1799, %v1797
  %v1802 = vpack.c.b16 %v1801, %v1801
  %v1807 = vunpack.c.l.b16 %v1784
  %v1808 = vunpack.c.l.b16 %v1785
  %v1809 = vunpack.c.l.b16 %v1786
  %v1810 = vunpack.c.l.b16 %v1787
  %v1811 = vpack.c.b16 %v1808, %v1807
  %v1812 = vpack.c.b16 %v1810, %v1809
  %v1816 = vsel %vm35, %v1802, 0
  %1818 = vmatprep.subr.bf16.mxu0 0
  %1819 = vmatpush1.bf16.msra.mxu0 %v1811
  %1820 = vmatprep.subr.bf16.mxu0 0
  %1821 = vmatpush1.bf16.msra.mxu0 %v1812
  %1822 = vmatprep.subr.bf16.mxu0 0
  %1823 = vmatpush1.bf16.msra.mxu0 0
  %1824 = vmatprep.subr.bf16.mxu0 0
  %1825 = vmatpush1.bf16.msra.mxu0 0
  %1826 = vmatprep.subr.bf16.mxu0 0
  %1827 = vmatpush1.bf16.msra.mxu0 0
  %1828 = vmatprep.subr.bf16.mxu0 0
  %1829 = vmatpush1.bf16.msra.mxu0 0
  %1830 = vmatprep.subr.bf16.mxu0 0
  %1831 = vmatpush1.bf16.msra.mxu0 0
  %1832 = vmatprep.subr.bf16.mxu0 0
  %1833 = vmatpush1.bf16.msra.mxu0 0
  %1834 = vmatprep.subr.bf16.mxu0 0
  %1835 = vmatpush1.bf16.msra.mxu0 0
  %1836 = vmatprep.subr.bf16.mxu0 0
  %1837 = vmatpush1.bf16.msra.mxu0 0
  %1838 = vmatprep.subr.bf16.mxu0 0
  %1839 = vmatpush1.bf16.msra.mxu0 0
  %1840 = vmatprep.subr.bf16.mxu0 0
  %1841 = vmatpush1.bf16.msra.mxu0 0
  %1842 = vmatprep.subr.bf16.mxu0 0
  %1843 = vmatpush1.bf16.msra.mxu0 0
  %1844 = vmatprep.subr.bf16.mxu0 0
  %1845 = vmatpush1.bf16.msra.mxu0 0
  %1846 = vmatprep.subr.bf16.mxu0 0
  %1847 = vmatpush1.bf16.msra.mxu0 0
  %1848 = vmatprep.subr.bf16.mxu0 0
  %1849 = vmatpush1.bf16.msra.mxu0 0
  %1850 = vmatprep.mubr.bf16.mxu0 0
  %1851 = vmatmul.mubr.bf16.gmra.mrb[0].mxu0 %v1816
  %v1852 = vpop.f32.mrb[0].mxu0
  %v1853 = vadd.f32 %v1794, %v1852
  %v1854 = vpop.f32.mrb[0].mxu0
  %v1855 = vpop.f32.mrb[0].mxu0
  %v1856 = vpop.f32.mrb[0].mxu0
  %1857 = vdwg.mxu0
  %v1858 = vtanh.pop %v1853
  %v1859 = vpack.c.bf16 %v1858, %v1858
  %v1860 = vld [vmem:[%s2 + $0x3] sm:$0x1]
  %v1861 = vlaneseq
  %v1862 = vshrl.u32 %v1861, 7
  %v1863 = vsub.s32 0, %v1862
  %v1864 = vrot.slane %v1860, %v1863
  %1865 = vrot.lane.b32.xlu0 %v1811, 96
  %v1866 = vpop.permute.xlu0 %1865
  %1867 = vrot.lane.b32.xlu0 %v1812, 96
  %v1868 = vpop.permute.xlu0 %1867
  %v1872 = vsel %vm35, %v1859, 0
  %1874 = vmatprep.subr.bf16.mxu0 0
  %1875 = vmatpush1.bf16.msra.mxu0 %v1866
  %1876 = vmatprep.subr.bf16.mxu0 0
  %1877 = vmatpush1.bf16.msra.mxu0 %v1868
  %1878 = vmatprep.subr.bf16.mxu0 0
  %1879 = vmatpush1.bf16.msra.mxu0 0
  %1880 = vmatprep.subr.bf16.mxu0 0
  %1881 = vmatpush1.bf16.msra.mxu0 0
  %1882 = vmatprep.subr.bf16.mxu0 0
  %1883 = vmatpush1.bf16.msra.mxu0 0
  %1884 = vmatprep.subr.bf16.mxu0 0
  %1885 = vmatpush1.bf16.msra.mxu0 0
  %1886 = vmatprep.subr.bf16.mxu0 0
  %1887 = vmatpush1.bf16.msra.mxu0 0
  %1888 = vmatprep.subr.bf16.mxu0 0
  %1889 = vmatpush1.bf16.msra.mxu0 0
  %1890 = vmatprep.subr.bf16.mxu0 0
  %1891 = vmatpush1.bf16.msra.mxu0 0
  %1892 = vmatprep.subr.bf16.mxu0 0
  %1893 = vmatpush1.bf16.msra.mxu0 0
  %1894 = vmatprep.subr.bf16.mxu0 0
  %1895 = vmatpush1.bf16.msra.mxu0 0
  %1896 = vmatprep.subr.bf16.mxu0 0
  %1897 = vmatpush1.bf16.msra.mxu0 0
  %1898 = vmatprep.subr.bf16.mxu0 0
  %1899 = vmatpush1.bf16.msra.mxu0 0
  %1900 = vmatprep.subr.bf16.mxu0 0
  %1901 = vmatpush1.bf16.msra.mxu0 0
  %1902 = vmatprep.subr.bf16.mxu0 0
  %1903 = vmatpush1.bf16.msra.mxu0 0
  %1904 = vmatprep.subr.bf16.mxu0 0
  %1905 = vmatpush1.bf16.msra.mxu0 0
  %1906 = vmatprep.mubr.bf16.mxu0 0
  %1907 = vmatmul.mubr.bf16.gmra.mrb[0].mxu0 %v1872
  %v1908 = vpop.f32.mrb[0].mxu0
  %v1909 = vadd.f32 %v1864, %v1908
  %v1910 = vpop.f32.mrb[0].mxu0
  %v1911 = vpop.f32.mrb[0].mxu0
  %v1912 = vpop.f32.mrb[0].mxu0
  %1913 = vdwg.mxu0
  %1915 = vrot.lane.b32.xlu0 %v1909, 32
  %v1916 = vpop.permute.xlu0 %1915
  %v1918 = vsel %vm35, %v1858, %v1916
  %vm1919 = vcmask 279552
  %1920 = vst.msk [vmem:[%s8] sm:$0x3] %vm1919, %v1918
  // Predicated region
  $region34: #{transformer_forward.1} parent=0 // pred_check
    _
  $region35: #{transformer_forward.1} parent=0 // pred_check_branch
    %1922 = sbr.rel (0) target = $region37
  $region36: #{transformer_forward.1} parent=0 // pred_region
    _
  $region37: #{transformer_forward.1} parent=0 // pred_fallthru
    _
  // Predicated region
  $region38: #{transformer_forward.1} parent=0 // pred_check
    _
  $region39: #{transformer_forward.1} parent=0 // pred_check_branch
    %1924 = sbr.rel (0) target = $region41
  $region40: #{transformer_forward.1} parent=0 // pred_region
    _
  $region41: #{transformer_forward.1} parent=0 // pred_fallthru
    _

</llo_original>
